<compile_context>
chip_gen: v6e
topology: v6e:2x2x1
jax: 0.10.0
libtpu: 0.0.40
codegen_flags: <defaults>
</compile_context>

<pallas_src>
import math
import numpy as np
import jax
import jax.numpy as jnp
from jax.experimental import pallas as pl
from jax.experimental.pallas import tpu as pltpu


# ----------------------------------------------------------------------------
# Averaging masks (built once, in the wrapper, with numpy)
# ----------------------------------------------------------------------------
def _mean_matrices_np(O, I):
    """Averaging masks so row/col means are lane-dense MXU dots on W_flat (C, O*I).

      Mcol[s, o] = 1/I  if s // I == o  ->  W_flat @ Mcol = mean over in-dim  (== w.mean(-1))
      Mrow[s, i] = 1/O  if s %  I == i  ->  W_flat @ Mrow = mean over out-dim (== w.mean(-2))
    """
    S = O * I
    s = np.arange(S)
    m_col = np.zeros((S, O), np.float32)
    m_col[s, s // I] = 1.0 / I
    m_row = np.zeros((S, I), np.float32)
    m_row[s, s % I] = 1.0 / O
    return jnp.asarray(m_row), jnp.asarray(m_col)


# ----------------------------------------------------------------------------
# Fused Pallas kernel
# ----------------------------------------------------------------------------
def _make_np_kernel(L, Os, Is, cw_outs):
    """Build the fused NPLinear kernel for a fixed (static) layer configuration."""

    def kernel(*refs):
        # -------- unpack refs (order fixed by np_linear_forward) ------------
        wfs = [refs[2 * i][0] for i in range(L)]                  # (C_i, O_i*I_i)
        bfs = [refs[2 * i + 1][0] for i in range(L)]              # (c_in, O_i)
        p0 = 2 * L
        lws = [refs[p0 + 3 * i][...] for i in range(L)]           # (cw_out_i, C_i)
        rws = [refs[p0 + 3 * i + 1][...] for i in range(L)]       # (cw_out_i, row_in_i)
        cwrcs = [refs[p0 + 3 * i + 2][...] for i in range(L)]     # (cw_out_i+c_out, col_in_i+n_rc+1)
        m0 = 5 * L
        mrows = [refs[m0 + 2 * i][...] for i in range(L)]         # (O_i*I_i, I_i)
        mcols = [refs[m0 + 2 * i + 1][...] for i in range(L)]     # (O_i*I_i, O_i)
        o0 = 7 * L
        outw = [refs[o0 + 2 * i] for i in range(L)]
        outb = [refs[o0 + 2 * i + 1] for i in range(L)]

        # -------- means for every layer (W resident once, read once) --------
        row_means, col_means, rc_cols, b_cols = [], [], [], []
        for i in range(L):
            row_means.append(jnp.dot(wfs[i], mrows[i], preferred_element_type=jnp.float32))  # (C_i, I_i)
            col_means.append(jnp.dot(wfs[i], mcols[i], preferred_element_type=jnp.float32))  # (C_i, O_i)
            rc_cols.append(jnp.mean(wfs[i], axis=-1, keepdims=True))                         # (C_i, 1)
            b_cols.append(jnp.mean(bfs[i], axis=-1, keepdims=True))                          # (c_in, 1)
        # wb column = [rowcol means of all layers ; bias means of all layers ; 1]
        wb_col = jnp.concatenate(rc_cols + b_cols + [jnp.ones((1, 1), jnp.float32)], axis=0)

        # -------- per-layer outputs ------------------------------------------
        for i in range(L):
            O, I, cw = Os[i], Is[i], cw_outs[i]
            S = O * I

            # row-broadcast stack (channels x I_i)
            row_parts = [row_means[i]]
            if i > 0:
                prev_o = Os[i - 1]
                if I == prev_o:
                    row_parts.extend([col_means[i - 1], bfs[i - 1]])
                elif I % prev_o == 0:
                    nrep = I // prev_o
                    row_parts.extend([jnp.tile(col_means[i - 1], (1, nrep)),
                                      jnp.tile(bfs[i - 1], (1, nrep))])
                else:
                    raise ValueError("Error in the shapes during the broadcast of the previous layer")
            row_b = row_parts[0] if len(row_parts) == 1 else jnp.concatenate(row_parts, axis=0)

            # col-broadcast stack (channels x O_i), augmented with [wb ; 1] rows so the
            # rank-1 rc terms and every bias are carried by the same MXU dot.
            col_parts = [col_means[i], bfs[i]]
            if i < L - 1:
                nxt_i = Is[i + 1]
                if nxt_i == O:
                    col_parts.append(row_means[i + 1])
                elif nxt_i % O == 0:
                    r = row_means[i + 1]
                    col_parts.append(r.reshape(r.shape[0], nxt_i // O, O).mean(axis=-2))
                else:
                    raise ValueError("Error in the shapes during the broadcast of the next layer")
            col_parts.append(jnp.broadcast_to(wb_col, (wb_col.shape[0], O)))
            col_b = jnp.concatenate(col_parts, axis=0)

            # exactly three MXU dots per layer
            z1 = jnp.dot(lws[i], wfs[i], preferred_element_type=jnp.float32)    # (cw, S)
            z3 = jnp.dot(rws[i], row_b, preferred_element_type=jnp.float32)     # (cw, I)
            zu = jnp.dot(cwrcs[i], col_b, preferred_element_type=jnp.float32)   # (cw+c_out, O)
            z4 = zu[:cw]      # layer_i_c + layer_i_rc + (lb + rcb + rb + cb)
            u1 = zu[cw:]      # bias_i    + bias_i_rc  + (bb + brcb)

            # broadcast adds in flattened lane space (W itself is never reshaped)
            z3_full = jnp.broadcast_to(z3[:, None, :], (cw, O, I)).reshape(cw, S)
            z4_full = jnp.broadcast_to(z4[:, :, None], (cw, O, I)).reshape(cw, S)
            outw[i][0] = z1 + z3_full + z4_full
            outb[i][0] = u1

    return kernel


def pack_layer_params(layer_params):
    """Fuse the 12 per-layer NPLinear parameter tensors into 3 lane-dense matrices."""
    lw, lb, rcw, rcb, rw, rb, cw, cb, bw, bb, brcw, brcb = layer_params
    w_bias = lb + rcb + rb + cb                        # (cw_out, 1): all weight-path biases
    b_bias = bb + brcb                                 # (c_out, 1):  all bias-path biases
    top = jnp.concatenate([cw, rcw, w_bias], axis=1)   # (cw_out, col_in + n_rc + 1)
    bot = jnp.concatenate([bw, brcw, b_bias], axis=1)  # (c_out,  col_in + n_rc + 1)
    return lw, rw, jnp.concatenate([top, bot], axis=0)


def np_linear_forward(params_in, mod_params, c_in, c_out, io_embed=False, io_embed_params=None):
    params, original_shapes = shape_params_symmetry_jax(list(params_in))
    if io_embed:
        # TODO(synk): io_embed (additive learned embeddings) is plain-JAX glue, not exercised here.
        in_e, out_e, out_b_e = io_embed_params
        params = [params[0] + in_e] + list(params[1:-2]) + [params[-2] + out_e, params[-1] + out_b_e]
    weights = params[::2]
    biases = params[1::2]
    L = len(weights)
    B = weights[0].shape[0]
    Cs = [int(w.shape[1]) for w in weights]
    Os = [int(w.shape[2]) for w in weights]
    Is = [int(w.shape[3]) for w in weights]

    # Flatten (O, I) -> O*I in the wrapper (contiguous, free) so the kernel is lane-dense.
    wf = [weights[i].reshape(B, Cs[i], Os[i] * Is[i]).astype(jnp.float32) for i in range(L)]
    bf = [b.astype(jnp.float32) for b in biases]
    packed = [pack_layer_params(mod_params[i]) for i in range(L)]
    cw_outs = [int(p[0].shape[0]) for p in packed]
    masks = [_mean_matrices_np(Os[i], Is[i]) for i in range(L)]   # (m_row, m_col) per layer

    inputs, in_specs = [], []
    for i in range(L):
        inputs += [wf[i], bf[i]]
        in_specs += [pl.BlockSpec((1, Cs[i], Os[i] * Is[i]), lambda b: (b, 0, 0)),
                     pl.BlockSpec((1, c_in, Os[i]), lambda b: (b, 0, 0))]
    for i in range(L):
        for p in packed[i]:
            inputs.append(p)
            in_specs.append(pl.BlockSpec(p.shape, lambda b: (0, 0)))
    for i in range(L):
        m_row, m_col = masks[i]
        inputs += [m_row, m_col]
        in_specs += [pl.BlockSpec(m_row.shape, lambda b: (0, 0)),
                     pl.BlockSpec(m_col.shape, lambda b: (0, 0))]

    out_shape, out_specs = [], []
    for i in range(L):
        out_shape += [jax.ShapeDtypeStruct((B, cw_outs[i], Os[i] * Is[i]), jnp.float32),
                      jax.ShapeDtypeStruct((B, c_out, Os[i]), jnp.float32)]
        out_specs += [pl.BlockSpec((1, cw_outs[i], Os[i] * Is[i]), lambda b: (b, 0, 0)),
                      pl.BlockSpec((1, c_out, Os[i]), lambda b: (b, 0, 0))]

    outs = pl.pallas_call(
        _make_np_kernel(L, Os, Is, cw_outs),
        out_shape=tuple(out_shape),
        grid=(B,),
        in_specs=in_specs,
        out_specs=tuple(out_specs),
        compiler_params=pltpu.CompilerParams(
            dimension_semantics=("parallel",),     # B >= 2 keeps both v7x TensorCores busy
            vmem_limit_bytes=32 * 1024 * 1024,     # explicit, safe on v5e / v6e / v7x
        ),
    )(*inputs)

    out_params = []
    for i in range(L):
        out_params += [outs[2 * i].reshape(B, cw_outs[i], Os[i], Is[i]), outs[2 * i + 1]]
    return unshape_params_symmetry_jax(out_params, original_shapes)


# ----------------------------------------------------------------------------
# Plain-JAX glue (shape/unshape of >4-D conv params, parameter init)
# ----------------------------------------------------------------------------
def shape_params_symmetry_jax(params):
    original_shapes = [p.shape for p in params]
    reshaped = []
    for p in params:
        if p.ndim <= 4:
            reshaped.append(p)
        else:  # 'b c o i h w -> b (c h w) o i'
            b, c, o, i, h, w = p.shape
            reshaped.append(jnp.transpose(p, (0, 1, 4, 5, 2, 3)).reshape(b, c * h * w, o, i))
    return reshaped, original_shapes


def unshape_params_symmetry_jax(params, original_shapes):
    weights = params[::2]
    biases = params[1::2]
    weight_orig = original_shapes[::2]
    out = []
    for i, w in enumerate(weights):
        if len(weight_orig[i]) <= 4:
            out.append(w)
        else:  # 'b (c h w) o i -> b c o i h w'
            h, ww = weight_orig[i][-2:]
            b, chw, o, ii = w.shape
            c = chw // (h * ww)
            out.append(jnp.transpose(w.reshape(b, c, h, ww, o, ii), (0, 1, 4, 5, 2, 3)))
        out.append(biases[i])
    return out


def init_nplinear_params(key, parameter_shapes, c_in, c_out):
    """Deterministic init matching set_init_ shapes/bounds (Conv 1x1 kernels stored as (out,in))."""
    weight_shapes = parameter_shapes[::2]
    L = len(weight_shapes)
    filter_facs = [int(np.prod(s[2:])) for s in weight_shapes]
    n_rc_inp = L + sum(filter_facs)
    n_rc = n_rc_inp * c_in
    params = []
    for i in range(L):
        fac_i = filter_facs[i]
        row_in = fac_i * c_in
        col_in = (fac_i + 1) * c_in
        if i > 0:
            row_in += (filter_facs[i - 1] + 1) * c_in
        if i < L - 1:
            col_in += filter_facs[i + 1] * c_in
        cw_out = fac_i * c_out
        bd1 = math.sqrt(1.0 / (fac_i * c_in + n_rc + row_in + col_in))
        bd2 = math.sqrt(1.0 / (col_in + n_rc))
        shapes_bounds = [
            ((cw_out, fac_i * c_in), bd1), ((cw_out, 1), bd1),   # layer_i
            ((cw_out, n_rc), bd1), ((cw_out, 1), bd1),           # layer_i_rc
            ((cw_out, row_in), bd1), ((cw_out, 1), bd1),         # layer_i_r
            ((cw_out, col_in), bd1), ((cw_out, 1), bd1),         # layer_i_c
            ((c_out, col_in), bd2), ((c_out, 1), bd2),           # bias_i
            ((c_out, n_rc), bd2), ((c_out, 1), bd2),             # bias_i_rc
        ]
        layer_params = []
        for shape, bd in shapes_bounds:
            key, sub = jax.random.split(key)
            layer_params.append(jax.random.uniform(sub, shape, jnp.float32, -bd, bd))
        params.append(tuple(layer_params))
    return params


# ----------------------------------------------------------------------------
# Pure-JAX reference (correctness check; matching-shape broadcast case)
# ----------------------------------------------------------------------------
def reference_forward(params_in, mod_params, c_in, c_out):
    params, original_shapes = shape_params_symmetry_jax(list(params_in))
    weights = params[::2]
    biases = params[1::2]
    L = len(weights)
    row_means = [w.mean(axis=-2) for w in weights]
    col_means = [w.mean(axis=-1) for w in weights]
    rc_means = [w.mean(axis=(-2, -1)) for w in weights]
    b_means = [b.mean(axis=-1) for b in biases]
    wb = jnp.concatenate(rc_means + b_means, axis=-1)   # (B, n_rc)
    out_params = []
    for i in range(L):
        lw, lb, rcw, rcb, rw, rb, cw, cb, bw, bb, brcw, brcb = mod_params[i]
        w, b = weights[i], biases[i]
        row_b = [row_means[i]]
        col_b = [col_means[i], b]
        if i > 0:
            row_b.extend([col_means[i - 1], biases[i - 1]])
        if i < L - 1:
            col_b.append(row_means[i + 1])
        row_b = jnp.concatenate(row_b, axis=1)
        col_b = jnp.concatenate(col_b, axis=1)
        z1 = jnp.einsum("kc,bcoi->bkoi", lw, w) + lb[:, 0][None, :, None, None]
        z2 = (wb @ rcw.T + rcb[:, 0])[:, :, None, None]
        z3 = (jnp.einsum("kc,bci->bki", rw, row_b) + rb[:, 0][None, :, None])[:, :, None, :]
        z4 = (jnp.einsum("kc,bco->bko", cw, col_b) + cb[:, 0][None, :, None])[:, :, :, None]
        out_params.append(z1 + z2 + z3 + z4)
        u1 = jnp.einsum("kc,bco->bko", bw, col_b) + bb[:, 0][None, :, None]
        u2 = (wb @ brcw.T + brcb[:, 0])[:, :, None]
        out_params.append(u1 + u2)
    return unshape_params_symmetry_jax(out_params, original_shapes)


# ----------------------------------------------------------------------------
if __name__ == "__main__":
    key = jax.random.PRNGKey(0)
    B, c_in, c_out = 2, 4, 6
    # Underlying 2-layer MLP parameter shapes: [(W0), (b0), (W1), (b1)]
    parameter_shapes = [(16, 8), (16,), (10, 16), (10,)]

    k1, k2, k3, k4, kp = jax.random.split(key, 5)
    W0 = jax.random.normal(k1, (B, c_in, 16, 8), jnp.float32)
    b0 = jax.random.normal(k2, (B, c_in, 16), jnp.float32)
    W1 = jax.random.normal(k3, (B, c_in, 10, 16), jnp.float32)
    b1 = jax.random.normal(k4, (B, c_in, 10), jnp.float32)
    params_in = [W0, b0, W1, b1]

    mod_params = init_nplinear_params(kp, parameter_shapes, c_in, c_out)

    outs = np_linear_forward(params_in, mod_params, c_in, c_out, io_embed=False)
    outs = jax.block_until_ready(outs)

    refs = reference_forward(params_in, mod_params, c_in, c_out)
    for o, r in zip(outs, refs):
        assert o.shape == r.shape, (o.shape, r.shape)
        np.testing.assert_allclose(np.asarray(o), np.asarray(r), rtol=2e-3, atol=2e-3)

    print("KERNEL_OK")
</pallas_src>

<mosaic_0001>
module attributes {stable_mosaic.version = 11 : i64} {
  func.func @kernel(%arg0: i32, %arg1: memref<1x4x128xf32, #tpu.memory_space<vmem>>, %arg2: memref<1x4x16xf32, #tpu.memory_space<vmem>>, %arg3: memref<1x4x160xf32, #tpu.memory_space<vmem>>, %arg4: memref<1x4x10xf32, #tpu.memory_space<vmem>>, %arg5: memref<6x4xf32, #tpu.memory_space<vmem>>, %arg6: memref<6x4xf32, #tpu.memory_space<vmem>>, %arg7: memref<12x29xf32, #tpu.memory_space<vmem>>, %arg8: memref<6x4xf32, #tpu.memory_space<vmem>>, %arg9: memref<6x12xf32, #tpu.memory_space<vmem>>, %arg10: memref<12x25xf32, #tpu.memory_space<vmem>>, %arg11: memref<128x8xf32, #tpu.memory_space<vmem>>, %arg12: memref<128x16xf32, #tpu.memory_space<vmem>>, %arg13: memref<160x16xf32, #tpu.memory_space<vmem>>, %arg14: memref<160x10xf32, #tpu.memory_space<vmem>>, %arg15: memref<1x6x128xf32, #tpu.memory_space<vmem>>, %arg16: memref<1x6x16xf32, #tpu.memory_space<vmem>>, %arg17: memref<1x6x160xf32, #tpu.memory_space<vmem>>, %arg18: memref<1x6x10xf32, #tpu.memory_space<vmem>>) attributes {dimension_semantics = [#tpu.dimension_semantics<parallel>], iteration_bounds = array<i64: 2>, scalar_prefetch = 0 : i64, scratch_operands = 0 : i64, tpu.core_type = #tpu.core_type<tc>, window_params = [{transform_indices = @transform_0, window_bounds = array<i64: 1, 4, 128>}, {transform_indices = @transform_1, window_bounds = array<i64: 1, 4, 16>}, {transform_indices = @transform_2, window_bounds = array<i64: 1, 4, 160>}, {transform_indices = @transform_3, window_bounds = array<i64: 1, 4, 10>}, {pipeline_mode = #tpu.pipeline_mode<synchronous>, transform_indices = @transform_4, window_bounds = array<i64: 6, 4>}, {pipeline_mode = #tpu.pipeline_mode<synchronous>, transform_indices = @transform_5, window_bounds = array<i64: 6, 4>}, {pipeline_mode = #tpu.pipeline_mode<synchronous>, transform_indices = @transform_6, window_bounds = array<i64: 12, 29>}, {pipeline_mode = #tpu.pipeline_mode<synchronous>, transform_indices = @transform_7, window_bounds = array<i64: 6, 4>}, {pipeline_mode = #tpu.pipeline_mode<synchronous>, transform_indices = @transform_8, window_bounds = array<i64: 6, 12>}, {pipeline_mode = #tpu.pipeline_mode<synchronous>, transform_indices = @transform_9, window_bounds = array<i64: 12, 25>}, {pipeline_mode = #tpu.pipeline_mode<synchronous>, transform_indices = @transform_10, window_bounds = array<i64: 128, 8>}, {pipeline_mode = #tpu.pipeline_mode<synchronous>, transform_indices = @transform_11, window_bounds = array<i64: 128, 16>}, {pipeline_mode = #tpu.pipeline_mode<synchronous>, transform_indices = @transform_12, window_bounds = array<i64: 160, 16>}, {pipeline_mode = #tpu.pipeline_mode<synchronous>, transform_indices = @transform_13, window_bounds = array<i64: 160, 10>}, {transform_indices = @transform_14, window_bounds = array<i64: 1, 6, 128>}, {transform_indices = @transform_15, window_bounds = array<i64: 1, 6, 16>}, {transform_indices = @transform_16, window_bounds = array<i64: 1, 6, 160>}, {transform_indices = @transform_17, window_bounds = array<i64: 1, 6, 10>}]} {
    %c0 = arith.constant 0 : index
    %c0_0 = arith.constant 0 : index
    %c0_1 = arith.constant 0 : index
    %0 = vector.load %arg1[%c0, %c0_0, %c0_1] : memref<1x4x128xf32, #tpu.memory_space<vmem>>, vector<1x4x128xf32>
    %1 = vector.shape_cast %0 : vector<1x4x128xf32> to vector<4x128xf32>
    %c0_2 = arith.constant 0 : index
    %c0_3 = arith.constant 0 : index
    %c0_4 = arith.constant 0 : index
    %2 = vector.load %arg3[%c0_2, %c0_3, %c0_4] : memref<1x4x160xf32, #tpu.memory_space<vmem>>, vector<1x4x160xf32>
    %3 = vector.shape_cast %2 : vector<1x4x160xf32> to vector<4x160xf32>
    %c0_5 = arith.constant 0 : index
    %c0_6 = arith.constant 0 : index
    %c0_7 = arith.constant 0 : index
    %4 = vector.load %arg2[%c0_5, %c0_6, %c0_7] : memref<1x4x16xf32, #tpu.memory_space<vmem>>, vector<1x4x16xf32>
    %5 = vector.shape_cast %4 : vector<1x4x16xf32> to vector<4x16xf32>
    %c0_8 = arith.constant 0 : index
    %c0_9 = arith.constant 0 : index
    %c0_10 = arith.constant 0 : index
    %6 = vector.load %arg4[%c0_8, %c0_9, %c0_10] : memref<1x4x10xf32, #tpu.memory_space<vmem>>, vector<1x4x10xf32>
    %7 = vector.shape_cast %6 : vector<1x4x10xf32> to vector<4x10xf32>
    %c0_11 = arith.constant 0 : index
    %c0_12 = arith.constant 0 : index
    %8 = vector.load %arg5[%c0_11, %c0_12] : memref<6x4xf32, #tpu.memory_space<vmem>>, vector<6x4xf32>
    %c0_13 = arith.constant 0 : index
    %c0_14 = arith.constant 0 : index
    %9 = vector.load %arg8[%c0_13, %c0_14] : memref<6x4xf32, #tpu.memory_space<vmem>>, vector<6x4xf32>
    %c0_15 = arith.constant 0 : index
    %c0_16 = arith.constant 0 : index
    %10 = vector.load %arg6[%c0_15, %c0_16] : memref<6x4xf32, #tpu.memory_space<vmem>>, vector<6x4xf32>
    %c0_17 = arith.constant 0 : index
    %c0_18 = arith.constant 0 : index
    %11 = vector.load %arg9[%c0_17, %c0_18] : memref<6x12xf32, #tpu.memory_space<vmem>>, vector<6x12xf32>
    %c0_19 = arith.constant 0 : index
    %c0_20 = arith.constant 0 : index
    %12 = vector.load %arg7[%c0_19, %c0_20] : memref<12x29xf32, #tpu.memory_space<vmem>>, vector<12x29xf32>
    %c0_21 = arith.constant 0 : index
    %c0_22 = arith.constant 0 : index
    %13 = vector.load %arg10[%c0_21, %c0_22] : memref<12x25xf32, #tpu.memory_space<vmem>>, vector<12x25xf32>
    %c0_23 = arith.constant 0 : index
    %c0_24 = arith.constant 0 : index
    %14 = vector.load %arg11[%c0_23, %c0_24] : memref<128x8xf32, #tpu.memory_space<vmem>>, vector<128x8xf32>
    %c0_25 = arith.constant 0 : index
    %c0_26 = arith.constant 0 : index
    %15 = vector.load %arg13[%c0_25, %c0_26] : memref<160x16xf32, #tpu.memory_space<vmem>>, vector<160x16xf32>
    %c0_27 = arith.constant 0 : index
    %c0_28 = arith.constant 0 : index
    %16 = vector.load %arg12[%c0_27, %c0_28] : memref<128x16xf32, #tpu.memory_space<vmem>>, vector<128x16xf32>
    %c0_29 = arith.constant 0 : index
    %c0_30 = arith.constant 0 : index
    %17 = vector.load %arg14[%c0_29, %c0_30] : memref<160x10xf32, #tpu.memory_space<vmem>>, vector<160x10xf32>
    %cst = arith.constant dense<0.000000e+00> : vector<4x8xf32>
    %18 = tpu.matmul %1, %14, %cst {dimension_numbers = #tpu.dot_dimension_numbers<[1], [0], [0], [1], [0, 0, 1, 1], [], []>} : vector<4x128xf32>, vector<128x8xf32>, vector<4x8xf32> -> vector<4x8xf32>
    %cst_31 = arith.constant dense<0.000000e+00> : vector<4x16xf32>
    %19 = tpu.matmul %1, %16, %cst_31 {dimension_numbers = #tpu.dot_dimension_numbers<[1], [0], [0], [1], [0, 0, 1, 1], [], []>} : vector<4x128xf32>, vector<128x16xf32>, vector<4x16xf32> -> vector<4x16xf32>
    %cst_32 = arith.constant dense<0.000000e+00> : vector<4xf32>
    %20 = vector.multi_reduction <add>, %1, %cst_32 [1] : vector<4x128xf32> to vector<4xf32>
    %21 = vector.shape_cast %20 : vector<4xf32> to vector<4x1xf32>
    %cst_33 = arith.constant 1.280000e+02 : f32
    %22 = vector.broadcast %cst_33 : f32 to vector<4x1xf32>
    %23 = arith.divf %21, %22 : vector<4x1xf32>
    %cst_34 = arith.constant dense<0.000000e+00> : vector<4xf32>
    %24 = vector.multi_reduction <add>, %5, %cst_34 [1] : vector<4x16xf32> to vector<4xf32>
    %25 = vector.shape_cast %24 : vector<4xf32> to vector<4x1xf32>
    %cst_35 = arith.constant 1.600000e+01 : f32
    %26 = vector.broadcast %cst_35 : f32 to vector<4x1xf32>
    %27 = arith.divf %25, %26 : vector<4x1xf32>
    %cst_36 = arith.constant dense<0.000000e+00> : vector<4x16xf32>
    %28 = tpu.matmul %3, %15, %cst_36 {dimension_numbers = #tpu.dot_dimension_numbers<[1], [0], [0], [1], [0, 0, 1, 1], [], []>} : vector<4x160xf32>, vector<160x16xf32>, vector<4x16xf32> -> vector<4x16xf32>
    %cst_37 = arith.constant dense<0.000000e+00> : vector<4x10xf32>
    %29 = tpu.matmul %3, %17, %cst_37 {dimension_numbers = #tpu.dot_dimension_numbers<[1], [0], [0], [1], [0, 0, 1, 1], [], []>} : vector<4x160xf32>, vector<160x10xf32>, vector<4x10xf32> -> vector<4x10xf32>
    %cst_38 = arith.constant dense<0.000000e+00> : vector<4xf32>
    %30 = vector.multi_reduction <add>, %3, %cst_38 [1] : vector<4x160xf32> to vector<4xf32>
    %31 = vector.shape_cast %30 : vector<4xf32> to vector<4x1xf32>
    %cst_39 = arith.constant 1.600000e+02 : f32
    %32 = vector.broadcast %cst_39 : f32 to vector<4x1xf32>
    %33 = arith.divf %31, %32 : vector<4x1xf32>
    %cst_40 = arith.constant dense<0.000000e+00> : vector<4xf32>
    %34 = vector.multi_reduction <add>, %7, %cst_40 [1] : vector<4x10xf32> to vector<4xf32>
    %35 = vector.shape_cast %34 : vector<4xf32> to vector<4x1xf32>
    %cst_41 = arith.constant 1.000000e+01 : f32
    %36 = vector.broadcast %cst_41 : f32 to vector<4x1xf32>
    %37 = arith.divf %35, %36 : vector<4x1xf32>
    %cst_42 = arith.constant 1.000000e+00 : f32
    %38 = vector.broadcast %cst_42 : f32 to vector<1x1xf32>
    %39 = tpu.concatenate %23, %33, %27, %37, %38 in 0 : vector<4x1xf32>, vector<4x1xf32>, vector<4x1xf32>, vector<4x1xf32>, vector<1x1xf32> -> vector<17x1xf32>
    %40 = vector.shape_cast %39 : vector<17x1xf32> to vector<17x1xf32>
    %41 = vector.broadcast %40 : vector<17x1xf32> to vector<17x16xf32>
    %42 = tpu.concatenate %19, %5, %28, %41 in 0 : vector<4x16xf32>, vector<4x16xf32>, vector<4x16xf32>, vector<17x16xf32> -> vector<29x16xf32>
    %cst_43 = arith.constant dense<0.000000e+00> : vector<6x128xf32>
    %43 = tpu.matmul %8, %1, %cst_43 {dimension_numbers = #tpu.dot_dimension_numbers<[1], [0], [0], [1], [0, 0, 1, 1], [], []>} : vector<6x4xf32>, vector<4x128xf32>, vector<6x128xf32> -> vector<6x128xf32>
    %cst_44 = arith.constant dense<0.000000e+00> : vector<6x8xf32>
    %44 = tpu.matmul %10, %18, %cst_44 {dimension_numbers = #tpu.dot_dimension_numbers<[1], [0], [0], [1], [0, 0, 1, 1], [], []>} : vector<6x4xf32>, vector<4x8xf32>, vector<6x8xf32> -> vector<6x8xf32>
    %cst_45 = arith.constant dense<0.000000e+00> : vector<12x16xf32>
    %45 = tpu.matmul %12, %42, %cst_45 {dimension_numbers = #tpu.dot_dimension_numbers<[1], [0], [0], [1], [0, 0, 1, 1], [], []>} : vector<12x29xf32>, vector<29x16xf32>, vector<12x16xf32> -> vector<12x16xf32>
    %46 = vector.extract_strided_slice %45 {offsets = [0, 0], sizes = [6, 16], strides = [1, 1]} : vector<12x16xf32> to vector<6x16xf32>
    %47 = vector.extract_strided_slice %45 {offsets = [6, 0], sizes = [6, 16], strides = [1, 1]} : vector<12x16xf32> to vector<6x16xf32>
    %48 = vector.shape_cast %44 : vector<6x8xf32> to vector<6x1x8xf32>
    %49 = vector.shape_cast %48 : vector<6x1x8xf32> to vector<6x1x8xf32>
    %50 = vector.broadcast %49 : vector<6x1x8xf32> to vector<6x16x8xf32>
    %51 = vector.shape_cast %50 : vector<6x16x8xf32> to vector<6x128xf32>
    %52 = vector.shape_cast %46 : vector<6x16xf32> to vector<6x16x1xf32>
    %53 = vector.shape_cast %52 : vector<6x16x1xf32> to vector<6x16x1xf32>
    %54 = vector.broadcast %53 : vector<6x16x1xf32> to vector<6x16x8xf32>
    %55 = vector.shape_cast %54 : vector<6x16x8xf32> to vector<6x128xf32>
    %56 = arith.addf %43, %51 : vector<6x128xf32>
    %57 = arith.addf %56, %55 : vector<6x128xf32>
    %c0_46 = arith.constant 0 : index
    %c0_47 = arith.constant 0 : index
    %c0_48 = arith.constant 0 : index
    %58 = vector.load %arg15[%c0_46, %c0_47, %c0_48] : memref<1x6x128xf32, #tpu.memory_space<vmem>>, vector<1x6x128xf32>
    %59 = vector.shape_cast %58 : vector<1x6x128xf32> to vector<6x128xf32>
    %60 = vector.shape_cast %57 : vector<6x128xf32> to vector<1x6x128xf32>
    tpu.vector_store %arg15[%c0_46, %c0_47, %c0_48], %60 {strides = array<i32>} : memref<1x6x128xf32, #tpu.memory_space<vmem>>, vector<1x6x128xf32>,
    %c0_49 = arith.constant 0 : index
    %c0_50 = arith.constant 0 : index
    %c0_51 = arith.constant 0 : index
    %61 = vector.load %arg16[%c0_49, %c0_50, %c0_51] : memref<1x6x16xf32, #tpu.memory_space<vmem>>, vector<1x6x16xf32>
    %62 = vector.shape_cast %61 : vector<1x6x16xf32> to vector<6x16xf32>
    %63 = vector.shape_cast %47 : vector<6x16xf32> to vector<1x6x16xf32>
    tpu.vector_store %arg16[%c0_49, %c0_50, %c0_51], %63 {strides = array<i32>} : memref<1x6x16xf32, #tpu.memory_space<vmem>>, vector<1x6x16xf32>,
    %64 = tpu.concatenate %28, %19, %5 in 0 : vector<4x16xf32>, vector<4x16xf32>, vector<4x16xf32> -> vector<12x16xf32>
    %65 = vector.shape_cast %39 : vector<17x1xf32> to vector<17x1xf32>
    %66 = vector.broadcast %65 : vector<17x1xf32> to vector<17x10xf32>
    %67 = tpu.concatenate %29, %7, %66 in 0 : vector<4x10xf32>, vector<4x10xf32>, vector<17x10xf32> -> vector<25x10xf32>
    %cst_52 = arith.constant dense<0.000000e+00> : vector<6x160xf32>
    %68 = tpu.matmul %9, %3, %cst_52 {dimension_numbers = #tpu.dot_dimension_numbers<[1], [0], [0], [1], [0, 0, 1, 1], [], []>} : vector<6x4xf32>, vector<4x160xf32>, vector<6x160xf32> -> vector<6x160xf32>
    %cst_53 = arith.constant dense<0.000000e+00> : vector<6x16xf32>
    %69 = tpu.matmul %11, %64, %cst_53 {dimension_numbers = #tpu.dot_dimension_numbers<[1], [0], [0], [1], [0, 0, 1, 1], [], []>} : vector<6x12xf32>, vector<12x16xf32>, vector<6x16xf32> -> vector<6x16xf32>
    %cst_54 = arith.constant dense<0.000000e+00> : vector<12x10xf32>
    %70 = tpu.matmul %13, %67, %cst_54 {dimension_numbers = #tpu.dot_dimension_numbers<[1], [0], [0], [1], [0, 0, 1, 1], [], []>} : vector<12x25xf32>, vector<25x10xf32>, vector<12x10xf32> -> vector<12x10xf32>
    %71 = vector.extract_strided_slice %70 {offsets = [0, 0], sizes = [6, 10], strides = [1, 1]} : vector<12x10xf32> to vector<6x10xf32>
    %72 = vector.extract_strided_slice %70 {offsets = [6, 0], sizes = [6, 10], strides = [1, 1]} : vector<12x10xf32> to vector<6x10xf32>
    %73 = vector.shape_cast %69 : vector<6x16xf32> to vector<6x1x16xf32>
    %74 = vector.shape_cast %73 : vector<6x1x16xf32> to vector<6x1x16xf32>
    %75 = vector.broadcast %74 : vector<6x1x16xf32> to vector<6x10x16xf32>
    %76 = vector.shape_cast %75 : vector<6x10x16xf32> to vector<6x160xf32>
    %77 = vector.shape_cast %71 : vector<6x10xf32> to vector<6x10x1xf32>
    %78 = vector.shape_cast %77 : vector<6x10x1xf32> to vector<6x10x1xf32>
    %79 = vector.broadcast %78 : vector<6x10x1xf32> to vector<6x10x16xf32>
    %80 = vector.shape_cast %79 : vector<6x10x16xf32> to vector<6x160xf32>
    %81 = arith.addf %68, %76 : vector<6x160xf32>
    %82 = arith.addf %81, %80 : vector<6x160xf32>
    %c0_55 = arith.constant 0 : index
    %c0_56 = arith.constant 0 : index
    %c0_57 = arith.constant 0 : index
    %83 = vector.load %arg17[%c0_55, %c0_56, %c0_57] : memref<1x6x160xf32, #tpu.memory_space<vmem>>, vector<1x6x160xf32>
    %84 = vector.shape_cast %83 : vector<1x6x160xf32> to vector<6x160xf32>
    %85 = vector.shape_cast %82 : vector<6x160xf32> to vector<1x6x160xf32>
    tpu.vector_store %arg17[%c0_55, %c0_56, %c0_57], %85 {strides = array<i32>} : memref<1x6x160xf32, #tpu.memory_space<vmem>>, vector<1x6x160xf32>,
    %c0_58 = arith.constant 0 : index
    %c0_59 = arith.constant 0 : index
    %c0_60 = arith.constant 0 : index
    %86 = vector.load %arg18[%c0_58, %c0_59, %c0_60] : memref<1x6x10xf32, #tpu.memory_space<vmem>>, vector<1x6x10xf32>
    %87 = vector.shape_cast %86 : vector<1x6x10xf32> to vector<6x10xf32>
    %88 = vector.shape_cast %72 : vector<6x10xf32> to vector<1x6x10xf32>
    tpu.vector_store %arg18[%c0_58, %c0_59, %c0_60], %88 {strides = array<i32>} : memref<1x6x10xf32, #tpu.memory_space<vmem>>, vector<1x6x10xf32>,
    return
  }
  func.func @transform_0(%arg0: i32) -> (i32, i32, i32) {
    %c0_i32 = arith.constant 0 : i32
    %c0_i32_0 = arith.constant 0 : i32
    %c0_i32_1 = arith.constant 0 : i32
    return %arg0, %c0_i32, %c0_i32_0 : i32, i32, i32
  }
  func.func @transform_1(%arg0: i32) -> (i32, i32, i32) {
    %c0_i32 = arith.constant 0 : i32
    %c0_i32_0 = arith.constant 0 : i32
    %c0_i32_1 = arith.constant 0 : i32
    return %arg0, %c0_i32, %c0_i32_0 : i32, i32, i32
  }
  func.func @transform_2(%arg0: i32) -> (i32, i32, i32) {
    %c0_i32 = arith.constant 0 : i32
    %c0_i32_0 = arith.constant 0 : i32
    %c0_i32_1 = arith.constant 0 : i32
    return %arg0, %c0_i32, %c0_i32_0 : i32, i32, i32
  }
  func.func @transform_3(%arg0: i32) -> (i32, i32, i32) {
    %c0_i32 = arith.constant 0 : i32
    %c0_i32_0 = arith.constant 0 : i32
    %c0_i32_1 = arith.constant 0 : i32
    return %arg0, %c0_i32, %c0_i32_0 : i32, i32, i32
  }
  func.func @transform_4(%arg0: i32) -> (i32, i32) {
    %c0_i32 = arith.constant 0 : i32
    %c0_i32_0 = arith.constant 0 : i32
    %c0_i32_1 = arith.constant 0 : i32
    return %c0_i32, %c0_i32_0 : i32, i32
  }
  func.func @transform_5(%arg0: i32) -> (i32, i32) {
    %c0_i32 = arith.constant 0 : i32
    %c0_i32_0 = arith.constant 0 : i32
    %c0_i32_1 = arith.constant 0 : i32
    return %c0_i32, %c0_i32_0 : i32, i32
  }
  func.func @transform_6(%arg0: i32) -> (i32, i32) {
    %c0_i32 = arith.constant 0 : i32
    %c0_i32_0 = arith.constant 0 : i32
    %c0_i32_1 = arith.constant 0 : i32
    return %c0_i32, %c0_i32_0 : i32, i32
  }
  func.func @transform_7(%arg0: i32) -> (i32, i32) {
    %c0_i32 = arith.constant 0 : i32
    %c0_i32_0 = arith.constant 0 : i32
    %c0_i32_1 = arith.constant 0 : i32
    return %c0_i32, %c0_i32_0 : i32, i32
  }
  func.func @transform_8(%arg0: i32) -> (i32, i32) {
    %c0_i32 = arith.constant 0 : i32
    %c0_i32_0 = arith.constant 0 : i32
    %c0_i32_1 = arith.constant 0 : i32
    return %c0_i32, %c0_i32_0 : i32, i32
  }
  func.func @transform_9(%arg0: i32) -> (i32, i32) {
    %c0_i32 = arith.constant 0 : i32
    %c0_i32_0 = arith.constant 0 : i32
    %c0_i32_1 = arith.constant 0 : i32
    return %c0_i32, %c0_i32_0 : i32, i32
  }
  func.func @transform_10(%arg0: i32) -> (i32, i32) {
    %c0_i32 = arith.constant 0 : i32
    %c0_i32_0 = arith.constant 0 : i32
    %c0_i32_1 = arith.constant 0 : i32
    return %c0_i32, %c0_i32_0 : i32, i32
  }
  func.func @transform_11(%arg0: i32) -> (i32, i32) {
    %c0_i32 = arith.constant 0 : i32
    %c0_i32_0 = arith.constant 0 : i32
    %c0_i32_1 = arith.constant 0 : i32
    return %c0_i32, %c0_i32_0 : i32, i32
  }
  func.func @transform_12(%arg0: i32) -> (i32, i32) {
    %c0_i32 = arith.constant 0 : i32
    %c0_i32_0 = arith.constant 0 : i32
    %c0_i32_1 = arith.constant 0 : i32
    return %c0_i32, %c0_i32_0 : i32, i32
  }
  func.func @transform_13(%arg0: i32) -> (i32, i32) {
    %c0_i32 = arith.constant 0 : i32
    %c0_i32_0 = arith.constant 0 : i32
    %c0_i32_1 = arith.constant 0 : i32
    return %c0_i32, %c0_i32_0 : i32, i32
  }
  func.func @transform_14(%arg0: i32) -> (i32, i32, i32) {
    %c0_i32 = arith.constant 0 : i32
    %c0_i32_0 = arith.constant 0 : i32
    %c0_i32_1 = arith.constant 0 : i32
    return %arg0, %c0_i32, %c0_i32_0 : i32, i32, i32
  }
  func.func @transform_15(%arg0: i32) -> (i32, i32, i32) {
    %c0_i32 = arith.constant 0 : i32
    %c0_i32_0 = arith.constant 0 : i32
    %c0_i32_1 = arith.constant 0 : i32
    return %arg0, %c0_i32, %c0_i32_0 : i32, i32, i32
  }
  func.func @transform_16(%arg0: i32) -> (i32, i32, i32) {
    %c0_i32 = arith.constant 0 : i32
    %c0_i32_0 = arith.constant 0 : i32
    %c0_i32_1 = arith.constant 0 : i32
    return %arg0, %c0_i32, %c0_i32_0 : i32, i32, i32
  }
  func.func @transform_17(%arg0: i32) -> (i32, i32, i32) {
    %c0_i32 = arith.constant 0 : i32
    %c0_i32_0 = arith.constant 0 : i32
    %c0_i32_1 = arith.constant 0 : i32
    return %arg0, %c0_i32, %c0_i32_0 : i32, i32, i32
  }
}

</mosaic_0001>

<llo_original>
// kernel: tpu_custom_call.1
$region0: #{tpu_custom_call.1}
  #allocation0 [shape = 'u32[]', space=smem, size = 0x4, offset = 0x4, fixed_abs, tag = 'smem constant byte address 0x4 - core index']
  #allocation1 [shape = 'u32[144,128]{1,0:T(1,128)}', space=vmem, size = 0x12000, scoped, tag = 'internal scratch']
  %s0 = inlined_call_operand.vmem [shape: f32[2,4,128], index: 0, kind: input, shape index: {}]
  %s1 = inlined_call_operand.vmem [shape: f32[2,4,16], index: 1, kind: input, shape index: {}]
  %s2 = inlined_call_operand.vmem [shape: f32[2,4,160], index: 2, kind: input, shape index: {}]
  %s3 = inlined_call_operand.vmem [shape: f32[2,4,10], index: 3, kind: input, shape index: {}]
  %s4 = inlined_call_operand.vmem [shape: f32[6,4], index: 4, kind: input, shape index: {}]
  %s5 = inlined_call_operand.vmem [shape: f32[6,4], index: 5, kind: input, shape index: {}]
  %s6 = inlined_call_operand.vmem [shape: f32[12,29], index: 6, kind: input, shape index: {}]
  %s7 = inlined_call_operand.vmem [shape: f32[6,4], index: 7, kind: input, shape index: {}]
  %s8 = inlined_call_operand.vmem [shape: f32[6,12], index: 8, kind: input, shape index: {}]
  %s9 = inlined_call_operand.vmem [shape: f32[12,25], index: 9, kind: input, shape index: {}]
  %s10 = inlined_call_operand.vmem [shape: f32[128,8], index: 10, kind: input, shape index: {}]
  %s11 = inlined_call_operand.vmem [shape: f32[128,16], index: 11, kind: input, shape index: {}]
  %s12 = inlined_call_operand.vmem [shape: f32[160,16], index: 12, kind: input, shape index: {}]
  %s13 = inlined_call_operand.vmem [shape: f32[160,10], index: 13, kind: input, shape index: {}]
  %s14 = inlined_call_operand.vmem [shape: f32[2,6,128], index: 14, kind: output, shape index: {0}]
  %s15 = inlined_call_operand.vmem [shape: f32[2,6,16], index: 15, kind: output, shape index: {1}]
  %s16 = inlined_call_operand.vmem [shape: f32[2,6,160], index: 16, kind: output, shape index: {2}]
  %s17 = inlined_call_operand.vmem [shape: f32[2,6,10], index: 17, kind: output, shape index: {3}]
  %18 = xla_tuple %s14, %s15, %s16, %s17
  %s19 = sld [smem:[#allocation0]]
  $region113: #{tpu_custom_call.1} parent=0
    _
  %s21 = ssub.s32 1, %s19
  %s22 = scalar_select 0, %s21, %s19
  loop: start=0, step=1, limit=4
  $region2: #{tpu_custom_call.1} parent=0 // loop_pre_header
    _
  $region3: #{tpu_custom_call.1} parent=0 // loop_header
    %s24 = sphi 0, %s28
    %p25 = scmp.ge.s32.totalorder %s24, 4
    %s34 = sphi 0, %s36
    %s37 = sphi 0, %s34
    %s38 = sphi 0, %s37
    %s54 = sphi 0, %s38
    %s60 = sphi 0, %s62
    %s63 = sphi 0, %s60
    %s64 = sphi 0, %s63
    %s80 = sphi 0, %s64
    %s86 = sphi 0, %s88
    %s89 = sphi 0, %s86
    %s90 = sphi 0, %s89
    %s106 = sphi 0, %s90
    %s112 = sphi 0, %s114
    %s115 = sphi 0, %s112
    %s116 = sphi 0, %s115
    %s132 = sphi 0, %s116
    %s136 = sphi 0, %s136
    %s138 = sphi 0, %s136
    %s139 = sphi 0, %s138
    %s153 = sphi 0, %s139
    %s157 = sphi 0, %s157
    %s159 = sphi 0, %s157
    %s160 = sphi 0, %s159
    %s174 = sphi 0, %s160
    %s178 = sphi 0, %s178
    %s180 = sphi 0, %s178
    %s181 = sphi 0, %s180
    %s195 = sphi 0, %s181
    %s199 = sphi 0, %s199
    %s201 = sphi 0, %s199
    %s202 = sphi 0, %s201
    %s216 = sphi 0, %s202
    %s220 = sphi 0, %s220
    %s222 = sphi 0, %s220
    %s223 = sphi 0, %s222
    %s237 = sphi 0, %s223
    %s241 = sphi 0, %s241
    %s243 = sphi 0, %s241
    %s244 = sphi 0, %s243
    %s258 = sphi 0, %s244
    %s262 = sphi 0, %s262
    %s264 = sphi 0, %s262
    %s265 = sphi 0, %s264
    %s279 = sphi 0, %s265
    %s283 = sphi 0, %s283
    %s285 = sphi 0, %s283
    %s286 = sphi 0, %s285
    %s300 = sphi 0, %s286
    %s304 = sphi 0, %s304
    %s306 = sphi 0, %s304
    %s307 = sphi 0, %s306
    %s321 = sphi 0, %s307
    %s325 = sphi 0, %s325
    %s327 = sphi 0, %s325
    %s328 = sphi 0, %s327
    %s342 = sphi 0, %s328
    %s348 = sphi 0, %s350
    %s351 = sphi 0, %s348
    %s352 = sphi 0, %s351
    %s368 = sphi 0, %s352
    %s374 = sphi 0, %s376
    %s377 = sphi 0, %s374
    %s378 = sphi 0, %s377
    %s394 = sphi 0, %s378
    %s400 = sphi 0, %s402
    %s403 = sphi 0, %s400
    %s404 = sphi 0, %s403
    %s420 = sphi 0, %s404
    %s426 = sphi 0, %s428
    %s429 = sphi 0, %s426
    %s430 = sphi 0, %s429
    %s446 = sphi 0, %s430
  $region4: #{tpu_custom_call.1} parent=0 // loop_header_branch
    %27 = sbr.rel (%p25) target = $region8
  $region5: #{tpu_custom_call.1} parent=0 // loop_body
    %s29 = ssub.s32 %s24, 1
    %s30 = ssub.s32 %s24, 2
    %s31 = sadd.s32 %s24, 1
    %s32 = ssub.s32 %s24, %s31
    %p33 = scmp.eq.s32.totalorder %s32, 0
    %s35 = sadd.s32 %s34, 1
    %s36 = scalar_select %p33, %s34, %s35
    %p39 = pneg %p33
    %p40 = scmp.eq.s32.totalorder %s24, 1
    %p41 = por %p39, %p40
    %p42 = scmp.ne.s32.totalorder %s34, %s37
    %p43 = scmp.eq.s32.totalorder %s24, 0
    %p44 = por %p42, %p43
    %p45 = scmp.ne.s32.totalorder %s34, %s37
    %p46 = scmp.eq.s32.totalorder %s29, 1
    %p47 = por %p45, %p46
    %p48 = scmp.ne.s32.totalorder %s37, %s38
    %p49 = scmp.eq.s32.totalorder %s29, 0
    %p50 = por %p48, %p49
    %p51 = scmp.ne.s32.totalorder %s37, %s38
    %p52 = scmp.eq.s32.totalorder %s30, 1
    %p53 = por %p51, %p52
    %p55 = scmp.ne.s32.totalorder %s38, %s54
    %p56 = scmp.eq.s32.totalorder %s30, 0
    %p57 = por %p55, %p56
    %s58 = ssub.s32 %s24, %s31
    %p59 = scmp.eq.s32.totalorder %s58, 0
    %s61 = sadd.s32 %s60, 1
    %s62 = scalar_select %p59, %s60, %s61
    %p65 = pneg %p59
    %p66 = scmp.eq.s32.totalorder %s24, 1
    %p67 = por %p65, %p66
    %p68 = scmp.ne.s32.totalorder %s60, %s63
    %p69 = scmp.eq.s32.totalorder %s24, 0
    %p70 = por %p68, %p69
    %p71 = scmp.ne.s32.totalorder %s60, %s63
    %p72 = scmp.eq.s32.totalorder %s29, 1
    %p73 = por %p71, %p72
    %p74 = scmp.ne.s32.totalorder %s63, %s64
    %p75 = scmp.eq.s32.totalorder %s29, 0
    %p76 = por %p74, %p75
    %p77 = scmp.ne.s32.totalorder %s63, %s64
    %p78 = scmp.eq.s32.totalorder %s30, 1
    %p79 = por %p77, %p78
    %p81 = scmp.ne.s32.totalorder %s64, %s80
    %p82 = scmp.eq.s32.totalorder %s30, 0
    %p83 = por %p81, %p82
    %s84 = ssub.s32 %s24, %s31
    %p85 = scmp.eq.s32.totalorder %s84, 0
    %s87 = sadd.s32 %s86, 1
    %s88 = scalar_select %p85, %s86, %s87
    %p91 = pneg %p85
    %p92 = scmp.eq.s32.totalorder %s24, 1
    %p93 = por %p91, %p92
    %p94 = scmp.ne.s32.totalorder %s86, %s89
    %p95 = scmp.eq.s32.totalorder %s24, 0
    %p96 = por %p94, %p95
    %p97 = scmp.ne.s32.totalorder %s86, %s89
    %p98 = scmp.eq.s32.totalorder %s29, 1
    %p99 = por %p97, %p98
    %p100 = scmp.ne.s32.totalorder %s89, %s90
    %p101 = scmp.eq.s32.totalorder %s29, 0
    %p102 = por %p100, %p101
    %p103 = scmp.ne.s32.totalorder %s89, %s90
    %p104 = scmp.eq.s32.totalorder %s30, 1
    %p105 = por %p103, %p104
    %p107 = scmp.ne.s32.totalorder %s90, %s106
    %p108 = scmp.eq.s32.totalorder %s30, 0
    %p109 = por %p107, %p108
    %s110 = ssub.s32 %s24, %s31
    %p111 = scmp.eq.s32.totalorder %s110, 0
    %s113 = sadd.s32 %s112, 1
    %s114 = scalar_select %p111, %s112, %s113
    %p117 = pneg %p111
    %p118 = scmp.eq.s32.totalorder %s24, 1
    %p119 = por %p117, %p118
    %p120 = scmp.ne.s32.totalorder %s112, %s115
    %p121 = scmp.eq.s32.totalorder %s24, 0
    %p122 = por %p120, %p121
    %p123 = scmp.ne.s32.totalorder %s112, %s115
    %p124 = scmp.eq.s32.totalorder %s29, 1
    %p125 = por %p123, %p124
    %p126 = scmp.ne.s32.totalorder %s115, %s116
    %p127 = scmp.eq.s32.totalorder %s29, 0
    %p128 = por %p126, %p127
    %p129 = scmp.ne.s32.totalorder %s115, %s116
    %p130 = scmp.eq.s32.totalorder %s30, 1
    %p131 = por %p129, %p130
    %p133 = scmp.ne.s32.totalorder %s116, %s132
    %p134 = scmp.eq.s32.totalorder %s30, 0
    %p135 = por %p133, %p134
    %s137 = sadd.s32 %s136, 1
    %p140 = scmp.eq.s32.totalorder %s24, 1
    %p141 = scmp.ne.s32.totalorder %s136, %s138
    %p142 = scmp.eq.s32.totalorder %s24, 0
    %p143 = por %p141, %p142
    %p144 = scmp.ne.s32.totalorder %s136, %s138
    %p145 = scmp.eq.s32.totalorder %s29, 1
    %p146 = por %p144, %p145
    %p147 = scmp.ne.s32.totalorder %s138, %s139
    %p148 = scmp.eq.s32.totalorder %s29, 0
    %p149 = por %p147, %p148
    %p150 = scmp.ne.s32.totalorder %s138, %s139
    %p151 = scmp.eq.s32.totalorder %s30, 1
    %p152 = por %p150, %p151
    %p154 = scmp.ne.s32.totalorder %s139, %s153
    %p155 = scmp.eq.s32.totalorder %s30, 0
    %p156 = por %p154, %p155
    %s158 = sadd.s32 %s157, 1
    %p161 = scmp.eq.s32.totalorder %s24, 1
    %p162 = scmp.ne.s32.totalorder %s157, %s159
    %p163 = scmp.eq.s32.totalorder %s24, 0
    %p164 = por %p162, %p163
    %p165 = scmp.ne.s32.totalorder %s157, %s159
    %p166 = scmp.eq.s32.totalorder %s29, 1
    %p167 = por %p165, %p166
    %p168 = scmp.ne.s32.totalorder %s159, %s160
    %p169 = scmp.eq.s32.totalorder %s29, 0
    %p170 = por %p168, %p169
    %p171 = scmp.ne.s32.totalorder %s159, %s160
    %p172 = scmp.eq.s32.totalorder %s30, 1
    %p173 = por %p171, %p172
    %p175 = scmp.ne.s32.totalorder %s160, %s174
    %p176 = scmp.eq.s32.totalorder %s30, 0
    %p177 = por %p175, %p176
    %s179 = sadd.s32 %s178, 1
    %p182 = scmp.eq.s32.totalorder %s24, 1
    %p183 = scmp.ne.s32.totalorder %s178, %s180
    %p184 = scmp.eq.s32.totalorder %s24, 0
    %p185 = por %p183, %p184
    %p186 = scmp.ne.s32.totalorder %s178, %s180
    %p187 = scmp.eq.s32.totalorder %s29, 1
    %p188 = por %p186, %p187
    %p189 = scmp.ne.s32.totalorder %s180, %s181
    %p190 = scmp.eq.s32.totalorder %s29, 0
    %p191 = por %p189, %p190
    %p192 = scmp.ne.s32.totalorder %s180, %s181
    %p193 = scmp.eq.s32.totalorder %s30, 1
    %p194 = por %p192, %p193
    %p196 = scmp.ne.s32.totalorder %s181, %s195
    %p197 = scmp.eq.s32.totalorder %s30, 0
    %p198 = por %p196, %p197
    %s200 = sadd.s32 %s199, 1
    %p203 = scmp.eq.s32.totalorder %s24, 1
    %p204 = scmp.ne.s32.totalorder %s199, %s201
    %p205 = scmp.eq.s32.totalorder %s24, 0
    %p206 = por %p204, %p205
    %p207 = scmp.ne.s32.totalorder %s199, %s201
    %p208 = scmp.eq.s32.totalorder %s29, 1
    %p209 = por %p207, %p208
    %p210 = scmp.ne.s32.totalorder %s201, %s202
    %p211 = scmp.eq.s32.totalorder %s29, 0
    %p212 = por %p210, %p211
    %p213 = scmp.ne.s32.totalorder %s201, %s202
    %p214 = scmp.eq.s32.totalorder %s30, 1
    %p215 = por %p213, %p214
    %p217 = scmp.ne.s32.totalorder %s202, %s216
    %p218 = scmp.eq.s32.totalorder %s30, 0
    %p219 = por %p217, %p218
    %s221 = sadd.s32 %s220, 1
    %p224 = scmp.eq.s32.totalorder %s24, 1
    %p225 = scmp.ne.s32.totalorder %s220, %s222
    %p226 = scmp.eq.s32.totalorder %s24, 0
    %p227 = por %p225, %p226
    %p228 = scmp.ne.s32.totalorder %s220, %s222
    %p229 = scmp.eq.s32.totalorder %s29, 1
    %p230 = por %p228, %p229
    %p231 = scmp.ne.s32.totalorder %s222, %s223
    %p232 = scmp.eq.s32.totalorder %s29, 0
    %p233 = por %p231, %p232
    %p234 = scmp.ne.s32.totalorder %s222, %s223
    %p235 = scmp.eq.s32.totalorder %s30, 1
    %p236 = por %p234, %p235
    %p238 = scmp.ne.s32.totalorder %s223, %s237
    %p239 = scmp.eq.s32.totalorder %s30, 0
    %p240 = por %p238, %p239
    %s242 = sadd.s32 %s241, 1
    %p245 = scmp.eq.s32.totalorder %s24, 1
    %p246 = scmp.ne.s32.totalorder %s241, %s243
    %p247 = scmp.eq.s32.totalorder %s24, 0
    %p248 = por %p246, %p247
    %p249 = scmp.ne.s32.totalorder %s241, %s243
    %p250 = scmp.eq.s32.totalorder %s29, 1
    %p251 = por %p249, %p250
    %p252 = scmp.ne.s32.totalorder %s243, %s244
    %p253 = scmp.eq.s32.totalorder %s29, 0
    %p254 = por %p252, %p253
    %p255 = scmp.ne.s32.totalorder %s243, %s244
    %p256 = scmp.eq.s32.totalorder %s30, 1
    %p257 = por %p255, %p256
    %p259 = scmp.ne.s32.totalorder %s244, %s258
    %p260 = scmp.eq.s32.totalorder %s30, 0
    %p261 = por %p259, %p260
    %s263 = sadd.s32 %s262, 1
    %p266 = scmp.eq.s32.totalorder %s24, 1
    %p267 = scmp.ne.s32.totalorder %s262, %s264
    %p268 = scmp.eq.s32.totalorder %s24, 0
    %p269 = por %p267, %p268
    %p270 = scmp.ne.s32.totalorder %s262, %s264
    %p271 = scmp.eq.s32.totalorder %s29, 1
    %p272 = por %p270, %p271
    %p273 = scmp.ne.s32.totalorder %s264, %s265
    %p274 = scmp.eq.s32.totalorder %s29, 0
    %p275 = por %p273, %p274
    %p276 = scmp.ne.s32.totalorder %s264, %s265
    %p277 = scmp.eq.s32.totalorder %s30, 1
    %p278 = por %p276, %p277
    %p280 = scmp.ne.s32.totalorder %s265, %s279
    %p281 = scmp.eq.s32.totalorder %s30, 0
    %p282 = por %p280, %p281
    %s284 = sadd.s32 %s283, 1
    %p287 = scmp.eq.s32.totalorder %s24, 1
    %p288 = scmp.ne.s32.totalorder %s283, %s285
    %p289 = scmp.eq.s32.totalorder %s24, 0
    %p290 = por %p288, %p289
    %p291 = scmp.ne.s32.totalorder %s283, %s285
    %p292 = scmp.eq.s32.totalorder %s29, 1
    %p293 = por %p291, %p292
    %p294 = scmp.ne.s32.totalorder %s285, %s286
    %p295 = scmp.eq.s32.totalorder %s29, 0
    %p296 = por %p294, %p295
    %p297 = scmp.ne.s32.totalorder %s285, %s286
    %p298 = scmp.eq.s32.totalorder %s30, 1
    %p299 = por %p297, %p298
    %p301 = scmp.ne.s32.totalorder %s286, %s300
    %p302 = scmp.eq.s32.totalorder %s30, 0
    %p303 = por %p301, %p302
    %s305 = sadd.s32 %s304, 1
    %p308 = scmp.eq.s32.totalorder %s24, 1
    %p309 = scmp.ne.s32.totalorder %s304, %s306
    %p310 = scmp.eq.s32.totalorder %s24, 0
    %p311 = por %p309, %p310
    %p312 = scmp.ne.s32.totalorder %s304, %s306
    %p313 = scmp.eq.s32.totalorder %s29, 1
    %p314 = por %p312, %p313
    %p315 = scmp.ne.s32.totalorder %s306, %s307
    %p316 = scmp.eq.s32.totalorder %s29, 0
    %p317 = por %p315, %p316
    %p318 = scmp.ne.s32.totalorder %s306, %s307
    %p319 = scmp.eq.s32.totalorder %s30, 1
    %p320 = por %p318, %p319
    %p322 = scmp.ne.s32.totalorder %s307, %s321
    %p323 = scmp.eq.s32.totalorder %s30, 0
    %p324 = por %p322, %p323
    %s326 = sadd.s32 %s325, 1
    %p329 = scmp.eq.s32.totalorder %s24, 1
    %p330 = scmp.ne.s32.totalorder %s325, %s327
    %p331 = scmp.eq.s32.totalorder %s24, 0
    %p332 = por %p330, %p331
    %p333 = scmp.ne.s32.totalorder %s325, %s327
    %p334 = scmp.eq.s32.totalorder %s29, 1
    %p335 = por %p333, %p334
    %p336 = scmp.ne.s32.totalorder %s327, %s328
    %p337 = scmp.eq.s32.totalorder %s29, 0
    %p338 = por %p336, %p337
    %p339 = scmp.ne.s32.totalorder %s327, %s328
    %p340 = scmp.eq.s32.totalorder %s30, 1
    %p341 = por %p339, %p340
    %p343 = scmp.ne.s32.totalorder %s328, %s342
    %p344 = scmp.eq.s32.totalorder %s30, 0
    %p345 = por %p343, %p344
    %s346 = ssub.s32 %s24, %s31
    %p347 = scmp.eq.s32.totalorder %s346, 0
    %s349 = sadd.s32 %s348, 1
    %s350 = scalar_select %p347, %s348, %s349
    %p353 = pneg %p347
    %p354 = scmp.eq.s32.totalorder %s24, 1
    %p355 = por %p353, %p354
    %p356 = scmp.ne.s32.totalorder %s348, %s351
    %p357 = scmp.eq.s32.totalorder %s24, 0
    %p358 = por %p356, %p357
    %p359 = scmp.ne.s32.totalorder %s348, %s351
    %p360 = scmp.eq.s32.totalorder %s29, 1
    %p361 = por %p359, %p360
    %p362 = scmp.ne.s32.totalorder %s351, %s352
    %p363 = scmp.eq.s32.totalorder %s29, 0
    %p364 = por %p362, %p363
    %p365 = scmp.ne.s32.totalorder %s351, %s352
    %p366 = scmp.eq.s32.totalorder %s30, 1
    %p367 = por %p365, %p366
    %p369 = scmp.ne.s32.totalorder %s352, %s368
    %p370 = scmp.eq.s32.totalorder %s30, 0
    %p371 = por %p369, %p370
    %s372 = ssub.s32 %s24, %s31
    %p373 = scmp.eq.s32.totalorder %s372, 0
    %s375 = sadd.s32 %s374, 1
    %s376 = scalar_select %p373, %s374, %s375
    %p379 = pneg %p373
    %p380 = scmp.eq.s32.totalorder %s24, 1
    %p381 = por %p379, %p380
    %p382 = scmp.ne.s32.totalorder %s374, %s377
    %p383 = scmp.eq.s32.totalorder %s24, 0
    %p384 = por %p382, %p383
    %p385 = scmp.ne.s32.totalorder %s374, %s377
    %p386 = scmp.eq.s32.totalorder %s29, 1
    %p387 = por %p385, %p386
    %p388 = scmp.ne.s32.totalorder %s377, %s378
    %p389 = scmp.eq.s32.totalorder %s29, 0
    %p390 = por %p388, %p389
    %p391 = scmp.ne.s32.totalorder %s377, %s378
    %p392 = scmp.eq.s32.totalorder %s30, 1
    %p393 = por %p391, %p392
    %p395 = scmp.ne.s32.totalorder %s378, %s394
    %p396 = scmp.eq.s32.totalorder %s30, 0
    %p397 = por %p395, %p396
    %s398 = ssub.s32 %s24, %s31
    %p399 = scmp.eq.s32.totalorder %s398, 0
    %s401 = sadd.s32 %s400, 1
    %s402 = scalar_select %p399, %s400, %s401
    %p405 = pneg %p399
    %p406 = scmp.eq.s32.totalorder %s24, 1
    %p407 = por %p405, %p406
    %p408 = scmp.ne.s32.totalorder %s400, %s403
    %p409 = scmp.eq.s32.totalorder %s24, 0
    %p410 = por %p408, %p409
    %p411 = scmp.ne.s32.totalorder %s400, %s403
    %p412 = scmp.eq.s32.totalorder %s29, 1
    %p413 = por %p411, %p412
    %p414 = scmp.ne.s32.totalorder %s403, %s404
    %p415 = scmp.eq.s32.totalorder %s29, 0
    %p416 = por %p414, %p415
    %p417 = scmp.ne.s32.totalorder %s403, %s404
    %p418 = scmp.eq.s32.totalorder %s30, 1
    %p419 = por %p417, %p418
    %p421 = scmp.ne.s32.totalorder %s404, %s420
    %p422 = scmp.eq.s32.totalorder %s30, 0
    %p423 = por %p421, %p422
    %s424 = ssub.s32 %s24, %s31
    %p425 = scmp.eq.s32.totalorder %s424, 0
    %s427 = sadd.s32 %s426, 1
    %s428 = scalar_select %p425, %s426, %s427
    %p431 = pneg %p425
    %p432 = scmp.eq.s32.totalorder %s24, 1
    %p433 = por %p431, %p432
    %p434 = scmp.ne.s32.totalorder %s426, %s429
    %p435 = scmp.eq.s32.totalorder %s24, 0
    %p436 = por %p434, %p435
    %p437 = scmp.ne.s32.totalorder %s426, %s429
    %p438 = scmp.eq.s32.totalorder %s29, 1
    %p439 = por %p437, %p438
    %p440 = scmp.ne.s32.totalorder %s429, %s430
    %p441 = scmp.eq.s32.totalorder %s29, 0
    %p442 = por %p440, %p441
    %p443 = scmp.ne.s32.totalorder %s429, %s430
    %p444 = scmp.eq.s32.totalorder %s30, 1
    %p445 = por %p443, %p444
    %p447 = scmp.ne.s32.totalorder %s430, %s446
    %p448 = scmp.eq.s32.totalorder %s30, 0
    %p449 = por %p447, %p448
    %p450 = scmp.le.s32.totalorder 1, %s24
    %p451 = scmp.lt.s32.totalorder %s24, 3
    %p452 = pnand %p450, %p451
    %p453 = pneg %p452
    // Predicated region
    $region9: #{tpu_custom_call.1} parent=5 // pred_check
      _
    $region10: #{tpu_custom_call.1} parent=5 // pred_check_branch
      %455 = sbr.rel (%p452) target = $region12
    $region11: #{tpu_custom_call.1} parent=5 // pred_region
      %s456 = ssub.s32 %s24, 1
      // Predicated region
      $region13: #{tpu_custom_call.1} parent=11 // pred_check
        %p457 = pneg %p149
      $region14: #{tpu_custom_call.1} parent=11 // pred_check_branch
        %459 = sbr.rel (%p457) target = $region16
      $region15: #{tpu_custom_call.1} parent=11 // pred_region
        _
      $region16: #{tpu_custom_call.1} parent=11 // pred_fallthru
        _
      // Predicated region
      $region17: #{tpu_custom_call.1} parent=11 // pred_check
        %p460 = pneg %p170
      $region18: #{tpu_custom_call.1} parent=11 // pred_check_branch
        %462 = sbr.rel (%p460) target = $region20
      $region19: #{tpu_custom_call.1} parent=11 // pred_region
        _
      $region20: #{tpu_custom_call.1} parent=11 // pred_fallthru
        _
      // Predicated region
      $region21: #{tpu_custom_call.1} parent=11 // pred_check
        %p463 = pneg %p191
      $region22: #{tpu_custom_call.1} parent=11 // pred_check_branch
        %465 = sbr.rel (%p463) target = $region24
      $region23: #{tpu_custom_call.1} parent=11 // pred_region
        _
      $region24: #{tpu_custom_call.1} parent=11 // pred_fallthru
        _
      // Predicated region
      $region25: #{tpu_custom_call.1} parent=11 // pred_check
        %p466 = pneg %p212
      $region26: #{tpu_custom_call.1} parent=11 // pred_check_branch
        %468 = sbr.rel (%p466) target = $region28
      $region27: #{tpu_custom_call.1} parent=11 // pred_region
        _
      $region28: #{tpu_custom_call.1} parent=11 // pred_fallthru
        _
      // Predicated region
      $region29: #{tpu_custom_call.1} parent=11 // pred_check
        %p469 = pneg %p233
      $region30: #{tpu_custom_call.1} parent=11 // pred_check_branch
        %471 = sbr.rel (%p469) target = $region32
      $region31: #{tpu_custom_call.1} parent=11 // pred_region
        _
      $region32: #{tpu_custom_call.1} parent=11 // pred_fallthru
        _
      // Predicated region
      $region33: #{tpu_custom_call.1} parent=11 // pred_check
        %p472 = pneg %p254
      $region34: #{tpu_custom_call.1} parent=11 // pred_check_branch
        %474 = sbr.rel (%p472) target = $region36
      $region35: #{tpu_custom_call.1} parent=11 // pred_region
        _
      $region36: #{tpu_custom_call.1} parent=11 // pred_fallthru
        _
      // Predicated region
      $region37: #{tpu_custom_call.1} parent=11 // pred_check
        %p475 = pneg %p275
      $region38: #{tpu_custom_call.1} parent=11 // pred_check_branch
        %477 = sbr.rel (%p475) target = $region40
      $region39: #{tpu_custom_call.1} parent=11 // pred_region
        _
      $region40: #{tpu_custom_call.1} parent=11 // pred_fallthru
        _
      // Predicated region
      $region41: #{tpu_custom_call.1} parent=11 // pred_check
        %p478 = pneg %p296
      $region42: #{tpu_custom_call.1} parent=11 // pred_check_branch
        %480 = sbr.rel (%p478) target = $region44
      $region43: #{tpu_custom_call.1} parent=11 // pred_region
        _
      $region44: #{tpu_custom_call.1} parent=11 // pred_fallthru
        _
      // Predicated region
      $region45: #{tpu_custom_call.1} parent=11 // pred_check
        %p481 = pneg %p317
      $region46: #{tpu_custom_call.1} parent=11 // pred_check_branch
        %483 = sbr.rel (%p481) target = $region48
      $region47: #{tpu_custom_call.1} parent=11 // pred_region
        _
      $region48: #{tpu_custom_call.1} parent=11 // pred_fallthru
        _
      // Predicated region
      $region49: #{tpu_custom_call.1} parent=11 // pred_check
        %p484 = pneg %p338
      $region50: #{tpu_custom_call.1} parent=11 // pred_check_branch
        %486 = sbr.rel (%p484) target = $region52
      $region51: #{tpu_custom_call.1} parent=11 // pred_region
        _
      $region52: #{tpu_custom_call.1} parent=11 // pred_fallthru
        _
    $region12: #{tpu_custom_call.1} parent=5 // pred_fallthru
      _
    %p487 = scmp.lt.s32.totalorder %s24, 2
    // Predicated region
    $region53: #{tpu_custom_call.1} parent=5 // pred_check
      %p488 = pneg %p487
    $region54: #{tpu_custom_call.1} parent=5 // pred_check_branch
      %490 = sbr.rel (%p488) target = $region56
    $region55: #{tpu_custom_call.1} parent=5 // pred_region
      // Predicated region
      $region57: #{tpu_custom_call.1} parent=55 // pred_check
        %p491 = pneg %p44
      $region58: #{tpu_custom_call.1} parent=55 // pred_check_branch
        %493 = sbr.rel (%p491) target = $region60
      $region59: #{tpu_custom_call.1} parent=55 // pred_region
        %p494 = scmp.lt.s32.totalorder %s24, 1
        %s495 = scalar_select %p494, %s24, 1
        %s496 = smul.addr %s495, 4
        %s497 = scalar_lea.vmem %s0, %s496
      $region60: #{tpu_custom_call.1} parent=55 // pred_fallthru
        _
      // Predicated region
      $region61: #{tpu_custom_call.1} parent=55 // pred_check
        %p498 = pneg %p70
      $region62: #{tpu_custom_call.1} parent=55 // pred_check_branch
        %500 = sbr.rel (%p498) target = $region64
      $region63: #{tpu_custom_call.1} parent=55 // pred_region
        %p501 = scmp.lt.s32.totalorder %s24, 1
        %s502 = scalar_select %p501, %s24, 1
        %s503 = smul.addr %s502, 4
        %s504 = scalar_lea.vmem %s1, %s503
      $region64: #{tpu_custom_call.1} parent=55 // pred_fallthru
        _
      // Predicated region
      $region65: #{tpu_custom_call.1} parent=55 // pred_check
        %p505 = pneg %p96
      $region66: #{tpu_custom_call.1} parent=55 // pred_check_branch
        %507 = sbr.rel (%p505) target = $region68
      $region67: #{tpu_custom_call.1} parent=55 // pred_region
        %p508 = scmp.lt.s32.totalorder %s24, 1
        %s509 = scalar_select %p508, %s24, 1
        %s510 = smul.addr %s509, 2
        %s511 = smul.addr %s510, 4
        %s512 = scalar_lea.vmem %s2, %s511
      $region68: #{tpu_custom_call.1} parent=55 // pred_fallthru
        _
      // Predicated region
      $region69: #{tpu_custom_call.1} parent=55 // pred_check
        %p513 = pneg %p122
      $region70: #{tpu_custom_call.1} parent=55 // pred_check_branch
        %515 = sbr.rel (%p513) target = $region72
      $region71: #{tpu_custom_call.1} parent=55 // pred_region
        %p516 = scmp.lt.s32.totalorder %s24, 1
        %s517 = scalar_select %p516, %s24, 1
        %s518 = smul.addr %s517, 4
        %s519 = scalar_lea.vmem %s3, %s518
      $region72: #{tpu_custom_call.1} parent=55 // pred_fallthru
        _
    $region56: #{tpu_custom_call.1} parent=5 // pred_fallthru
      _
    %p520 = scmp.le.s32.totalorder 1, %s24
    %p521 = scmp.lt.s32.totalorder %s24, 3
    %p522 = pnand %p520, %p521
    %p523 = pneg %p522
    // Predicated region
    $region73: #{tpu_custom_call.1} parent=5 // pred_check
      _
    $region74: #{tpu_custom_call.1} parent=5 // pred_check_branch
      %525 = sbr.rel (%p522) target = $region76
    $region75: #{tpu_custom_call.1} parent=5 // pred_region
      %s526 = ssub.s32 %s24, 1
      %p527 = scmp.lt.s32.totalorder %s29, 1
      %s528 = scalar_select %p527, %s29, 1
      %s529 = smul.addr %s528, 4
      %s530 = scalar_lea.vmem %s0, %s529
      %p531 = pneg %p50
      %p532 = pneg %p47
      %p533 = scmp.lt.s32.totalorder %s29, 1
      %s534 = scalar_select %p533, %s29, 1
      %s535 = smul.addr %s534, 4
      %s536 = scalar_lea.vmem %s1, %s535
      %p537 = pneg %p76
      %p538 = pneg %p73
      %p539 = scmp.lt.s32.totalorder %s29, 1
      %s540 = scalar_select %p539, %s29, 1
      %s541 = smul.addr %s540, 2
      %s542 = smul.addr %s541, 4
      %s543 = scalar_lea.vmem %s2, %s542
      %p544 = pneg %p102
      %p545 = pneg %p99
      %p546 = scmp.lt.s32.totalorder %s29, 1
      %s547 = scalar_select %p546, %s29, 1
      %s548 = smul.addr %s547, 4
      %s549 = scalar_lea.vmem %s3, %s548
      %p550 = pneg %p128
      %p551 = pneg %p125
      %p552 = pneg %p149
      %p553 = pneg %p146
      %p554 = pneg %p170
      %p555 = pneg %p167
      %p556 = pneg %p191
      %p557 = pneg %p188
      %p558 = pneg %p212
      %p559 = pneg %p209
      %p560 = pneg %p233
      %p561 = pneg %p230
      %p562 = pneg %p254
      %p563 = pneg %p251
      %p564 = pneg %p275
      %p565 = pneg %p272
      %p566 = pneg %p296
      %p567 = pneg %p293
      %p568 = pneg %p317
      %p569 = pneg %p314
      %p570 = pneg %p338
      %p571 = pneg %p335
      %p572 = pneg %p364
      %p573 = pneg %p361
      %p574 = scmp.lt.s32.totalorder %s29, 1
      %s575 = scalar_select %p574, %s29, 1
      %s576 = smul.addr %s575, 8
      %s577 = scalar_lea.vmem %s14, %s576
      %p578 = pneg %p390
      %p579 = pneg %p387
      %p580 = scmp.lt.s32.totalorder %s29, 1
      %s581 = scalar_select %p580, %s29, 1
      %s582 = smul.addr %s581, 8
      %s583 = scalar_lea.vmem %s15, %s582
      %p584 = pneg %p416
      %p585 = pneg %p413
      %p586 = scmp.lt.s32.totalorder %s29, 1
      %s587 = scalar_select %p586, %s29, 1
      %s588 = smul.addr %s587, 2
      %s589 = smul.addr %s588, 8
      %s590 = scalar_lea.vmem %s16, %s589
      %p591 = pneg %p442
      %p592 = pneg %p439
      %p593 = scmp.lt.s32.totalorder %s29, 1
      %s594 = scalar_select %p593, %s29, 1
      %s595 = smul.addr %s594, 8
      %s596 = scalar_lea.vmem %s17, %s595
      %p597 = scmp.lt.s32.totalorder %s29, 1
      %s598 = scalar_select %p597, %s29, 1
      %s599 = smul.addr %s598, 4
      %s600 = scalar_lea.vmem %s0, %s599
      %p601 = scmp.lt.s32.totalorder %s29, 1
      %s602 = scalar_select %p601, %s29, 1
      %s603 = smul.addr %s602, 4
      %s604 = scalar_lea.vmem %s1, %s603
      %p605 = scmp.lt.s32.totalorder %s29, 1
      %s606 = scalar_select %p605, %s29, 1
      %s607 = smul.addr %s606, 2
      %s608 = smul.addr %s607, 4
      %s609 = scalar_lea.vmem %s2, %s608
      %p610 = scmp.lt.s32.totalorder %s29, 1
      %s611 = scalar_select %p610, %s29, 1
      %s612 = smul.addr %s611, 4
      %s613 = scalar_lea.vmem %s3, %s612
      %p614 = scmp.lt.s32.totalorder %s29, 1
      %s615 = scalar_select %p614, %s29, 1
      %s616 = smul.addr %s615, 8
      %s617 = scalar_lea.vmem %s14, %s616
      %p618 = scmp.lt.s32.totalorder %s29, 1
      %s619 = scalar_select %p618, %s29, 1
      %s620 = smul.addr %s619, 8
      %s621 = scalar_lea.vmem %s15, %s620
      %p622 = scmp.lt.s32.totalorder %s29, 1
      %s623 = scalar_select %p622, %s29, 1
      %s624 = smul.addr %s623, 2
      %s625 = smul.addr %s624, 8
      %s626 = scalar_lea.vmem %s16, %s625
      %p627 = scmp.lt.s32.totalorder %s29, 1
      %s628 = scalar_select %p627, %s29, 1
      %s629 = smul.addr %s628, 8
      %s630 = scalar_lea.vmem %s17, %s629
      %v631 = vld [vmem:[%s600] sm:$0xf]
      %v632 = vld [vmem:[%s609] sm:$0xff]
      %v633 = vld [vmem:[%s604] sm:$0xf]
      %v634 = vld [vmem:[%s613] sm:$0xf]
      %v635 = vld [vmem:[%s4] sm:$0x3f]
      %v636 = vld [vmem:[%s7] sm:$0x3f]
      %v637 = vld [vmem:[%s5] sm:$0x3f]
      %v638 = vld [vmem:[%s8] sm:$0x3f]
      %v639 = vld [vmem:[%s6] sm:$0xff]
      %v640 = vld [vmem:[%s6 + $0x8] sm:$0xf]
      %v641 = vld [vmem:[%s9] sm:$0xff]
      %v642 = vld [vmem:[%s9 + $0x8] sm:$0xf]
      %v643 = vld [vmem:[%s10] sm:$0xff]
      %v644 = vld [vmem:[%s10 + $0x8] sm:$0xff]
      %v645 = vld [vmem:[%s10 + $0x10] sm:$0xff]
      %v646 = vld [vmem:[%s10 + $0x18] sm:$0xff]
      %v647 = vld [vmem:[%s10 + $0x20] sm:$0xff]
      %v648 = vld [vmem:[%s10 + $0x28] sm:$0xff]
      %v649 = vld [vmem:[%s10 + $0x30] sm:$0xff]
      %v650 = vld [vmem:[%s10 + $0x38] sm:$0xff]
      %v651 = vld [vmem:[%s10 + $0x40] sm:$0xff]
      %v652 = vld [vmem:[%s10 + $0x48] sm:$0xff]
      %v653 = vld [vmem:[%s10 + $0x50] sm:$0xff]
      %v654 = vld [vmem:[%s10 + $0x58] sm:$0xff]
      %v655 = vld [vmem:[%s10 + $0x60] sm:$0xff]
      %v656 = vld [vmem:[%s10 + $0x68] sm:$0xff]
      %v657 = vld [vmem:[%s10 + $0x70] sm:$0xff]
      %v658 = vld [vmem:[%s10 + $0x78] sm:$0xff]
      %v659 = vld [vmem:[%s12] sm:$0xff]
      %v660 = vld [vmem:[%s12 + $0x8] sm:$0xff]
      %v661 = vld [vmem:[%s12 + $0x10] sm:$0xff]
      %v662 = vld [vmem:[%s12 + $0x18] sm:$0xff]
      %v663 = vld [vmem:[%s12 + $0x20] sm:$0xff]
      %v664 = vld [vmem:[%s12 + $0x28] sm:$0xff]
      %v665 = vld [vmem:[%s12 + $0x30] sm:$0xff]
      %v666 = vld [vmem:[%s12 + $0x38] sm:$0xff]
      %v667 = vld [vmem:[%s12 + $0x40] sm:$0xff]
      %v668 = vld [vmem:[%s12 + $0x48] sm:$0xff]
      %v669 = vld [vmem:[%s12 + $0x50] sm:$0xff]
      %v670 = vld [vmem:[%s12 + $0x58] sm:$0xff]
      %v671 = vld [vmem:[%s12 + $0x60] sm:$0xff]
      %v672 = vld [vmem:[%s12 + $0x68] sm:$0xff]
      %v673 = vld [vmem:[%s12 + $0x70] sm:$0xff]
      %v674 = vld [vmem:[%s12 + $0x78] sm:$0xff]
      %v675 = vld [vmem:[%s12 + $0x80] sm:$0xff]
      %v676 = vld [vmem:[%s12 + $0x88] sm:$0xff]
      %v677 = vld [vmem:[%s12 + $0x90] sm:$0xff]
      %v678 = vld [vmem:[%s12 + $0x98] sm:$0xff]
      %v679 = vld [vmem:[%s11] sm:$0xff]
      %v680 = vld [vmem:[%s11 + $0x8] sm:$0xff]
      %v681 = vld [vmem:[%s11 + $0x10] sm:$0xff]
      %v682 = vld [vmem:[%s11 + $0x18] sm:$0xff]
      %v683 = vld [vmem:[%s11 + $0x20] sm:$0xff]
      %v684 = vld [vmem:[%s11 + $0x28] sm:$0xff]
      %v685 = vld [vmem:[%s11 + $0x30] sm:$0xff]
      %v686 = vld [vmem:[%s11 + $0x38] sm:$0xff]
      %v687 = vld [vmem:[%s11 + $0x40] sm:$0xff]
      %v688 = vld [vmem:[%s11 + $0x48] sm:$0xff]
      %v689 = vld [vmem:[%s11 + $0x50] sm:$0xff]
      %v690 = vld [vmem:[%s11 + $0x58] sm:$0xff]
      %v691 = vld [vmem:[%s11 + $0x60] sm:$0xff]
      %v692 = vld [vmem:[%s11 + $0x68] sm:$0xff]
      %v693 = vld [vmem:[%s11 + $0x70] sm:$0xff]
      %v694 = vld [vmem:[%s11 + $0x78] sm:$0xff]
      %v695 = vld [vmem:[%s13] sm:$0xff]
      %v696 = vld [vmem:[%s13 + $0x8] sm:$0xff]
      %v697 = vld [vmem:[%s13 + $0x10] sm:$0xff]
      %v698 = vld [vmem:[%s13 + $0x18] sm:$0xff]
      %v699 = vld [vmem:[%s13 + $0x20] sm:$0xff]
      %v700 = vld [vmem:[%s13 + $0x28] sm:$0xff]
      %v701 = vld [vmem:[%s13 + $0x30] sm:$0xff]
      %v702 = vld [vmem:[%s13 + $0x38] sm:$0xff]
      %v703 = vld [vmem:[%s13 + $0x40] sm:$0xff]
      %v704 = vld [vmem:[%s13 + $0x48] sm:$0xff]
      %v705 = vld [vmem:[%s13 + $0x50] sm:$0xff]
      %v706 = vld [vmem:[%s13 + $0x58] sm:$0xff]
      %v707 = vld [vmem:[%s13 + $0x60] sm:$0xff]
      %v708 = vld [vmem:[%s13 + $0x68] sm:$0xff]
      %v709 = vld [vmem:[%s13 + $0x70] sm:$0xff]
      %v710 = vld [vmem:[%s13 + $0x78] sm:$0xff]
      %v711 = vld [vmem:[%s13 + $0x80] sm:$0xff]
      %v712 = vld [vmem:[%s13 + $0x88] sm:$0xff]
      %v713 = vld [vmem:[%s13 + $0x90] sm:$0xff]
      %v714 = vld [vmem:[%s13 + $0x98] sm:$0xff]
      %715 = vmatprep.subr.mxu0 0.0
      %716 = vmatpush1.msra.mxu0 %v658
      %717 = vmatprep.subr.mxu0 0.0
      %718 = vmatpush1.msra.mxu0 %v657
      %719 = vmatprep.subr.mxu0 0.0
      %720 = vmatpush1.msra.mxu0 %v656
      %721 = vmatprep.subr.mxu0 0.0
      %722 = vmatpush1.msra.mxu0 %v655
      %723 = vmatprep.subr.mxu0 0.0
      %724 = vmatpush1.msra.mxu0 %v654
      %725 = vmatprep.subr.mxu0 0.0
      %726 = vmatpush1.msra.mxu0 %v653
      %727 = vmatprep.subr.mxu0 0.0
      %728 = vmatpush1.msra.mxu0 %v652
      %729 = vmatprep.subr.mxu0 0.0
      %730 = vmatpush1.msra.mxu0 %v651
      %731 = vmatprep.subr.mxu0 0.0
      %732 = vmatpush1.msra.mxu0 %v650
      %733 = vmatprep.subr.mxu0 0.0
      %734 = vmatpush1.msra.mxu0 %v649
      %735 = vmatprep.subr.mxu0 0.0
      %736 = vmatpush1.msra.mxu0 %v648
      %737 = vmatprep.subr.mxu0 0.0
      %738 = vmatpush1.msra.mxu0 %v647
      %739 = vmatprep.subr.mxu0 0.0
      %740 = vmatpush1.msra.mxu0 %v646
      %741 = vmatprep.subr.mxu0 0.0
      %742 = vmatpush1.msra.mxu0 %v645
      %743 = vmatprep.subr.mxu0 0.0
      %744 = vmatpush1.msra.mxu0 %v644
      %745 = vmatprep.subr.mxu0 0.0
      %746 = vmatpush1.msra.mxu0 %v643
      %747 = vmatprep.subr.mxu0 0.0
      %748 = vmatpush2.msra.mxu0 0.0
      %749 = vmatprep.subr.mxu0 0.0
      %750 = vmatpush2.msra.mxu0 0.0
      %751 = vmatprep.subr.mxu0 0.0
      %752 = vmatpush2.msra.mxu0 0.0
      %753 = vmatprep.subr.mxu0 0.0
      %754 = vmatpush2.msra.mxu0 0.0
      %755 = vmatprep.subr.mxu0 0.0
      %756 = vmatpush2.msra.mxu0 0.0
      %757 = vmatprep.subr.mxu0 0.0
      %758 = vmatpush2.msra.mxu0 0.0
      %759 = vmatprep.subr.mxu0 0.0
      %760 = vmatpush2.msra.mxu0 0.0
      %761 = vmatprep.subr.mxu0 0.0
      %762 = vmatpush2.msra.mxu0 0.0
      %763 = vmatprep.subr.mxu0 0.0
      %764 = vmatpush2.msra.mxu0 0.0
      %765 = vmatprep.subr.mxu0 0.0
      %766 = vmatpush2.msra.mxu0 0.0
      %767 = vmatprep.subr.mxu0 0.0
      %768 = vmatpush2.msra.mxu0 0.0
      %769 = vmatprep.subr.mxu0 0.0
      %770 = vmatpush2.msra.mxu0 0.0
      %771 = vmatprep.subr.mxu0 0.0
      %772 = vmatpush2.msra.mxu0 0.0
      %773 = vmatprep.subr.mxu0 0.0
      %774 = vmatpush2.msra.mxu0 0.0
      %775 = vmatprep.subr.mxu0 0.0
      %776 = vmatpush2.msra.mxu0 0.0
      %777 = vmatprep.subr.mxu0 0.0
      %778 = vmatpush2.msra.mxu0 0.0
      %779 = vmatprep.mubr.f32.mxu0 0.0
      %780 = vmatmul.mubr.f32.gmra.mxu0 %v631
      %v781 = vpop.f32.mrf.mxu0
      %v782 = vadd.f32 0.0, %v781
      %v783 = vpop.f32.mrf.mxu0
      %784 = vdwg.mxu0
      %785 = vmatprep.subr.mxu0 0.0
      %786 = vmatpush1.msra.mxu0 %v694
      %787 = vmatprep.subr.mxu0 0.0
      %788 = vmatpush1.msra.mxu0 %v693
      %789 = vmatprep.subr.mxu0 0.0
      %790 = vmatpush1.msra.mxu0 %v692
      %791 = vmatprep.subr.mxu0 0.0
      %792 = vmatpush1.msra.mxu0 %v691
      %793 = vmatprep.subr.mxu0 0.0
      %794 = vmatpush1.msra.mxu0 %v690
      %795 = vmatprep.subr.mxu0 0.0
      %796 = vmatpush1.msra.mxu0 %v689
      %797 = vmatprep.subr.mxu0 0.0
      %798 = vmatpush1.msra.mxu0 %v688
      %799 = vmatprep.subr.mxu0 0.0
      %800 = vmatpush1.msra.mxu0 %v687
      %801 = vmatprep.subr.mxu0 0.0
      %802 = vmatpush1.msra.mxu0 %v686
      %803 = vmatprep.subr.mxu0 0.0
      %804 = vmatpush1.msra.mxu0 %v685
      %805 = vmatprep.subr.mxu0 0.0
      %806 = vmatpush1.msra.mxu0 %v684
      %807 = vmatprep.subr.mxu0 0.0
      %808 = vmatpush1.msra.mxu0 %v683
      %809 = vmatprep.subr.mxu0 0.0
      %810 = vmatpush1.msra.mxu0 %v682
      %811 = vmatprep.subr.mxu0 0.0
      %812 = vmatpush1.msra.mxu0 %v681
      %813 = vmatprep.subr.mxu0 0.0
      %814 = vmatpush1.msra.mxu0 %v680
      %815 = vmatprep.subr.mxu0 0.0
      %816 = vmatpush1.msra.mxu0 %v679
      %817 = vmatprep.subr.mxu0 0.0
      %818 = vmatpush2.msra.mxu0 0.0
      %819 = vmatprep.subr.mxu0 0.0
      %820 = vmatpush2.msra.mxu0 0.0
      %821 = vmatprep.subr.mxu0 0.0
      %822 = vmatpush2.msra.mxu0 0.0
      %823 = vmatprep.subr.mxu0 0.0
      %824 = vmatpush2.msra.mxu0 0.0
      %825 = vmatprep.subr.mxu0 0.0
      %826 = vmatpush2.msra.mxu0 0.0
      %827 = vmatprep.subr.mxu0 0.0
      %828 = vmatpush2.msra.mxu0 0.0
      %829 = vmatprep.subr.mxu0 0.0
      %830 = vmatpush2.msra.mxu0 0.0
      %831 = vmatprep.subr.mxu0 0.0
      %832 = vmatpush2.msra.mxu0 0.0
      %833 = vmatprep.subr.mxu0 0.0
      %834 = vmatpush2.msra.mxu0 0.0
      %835 = vmatprep.subr.mxu0 0.0
      %836 = vmatpush2.msra.mxu0 0.0
      %837 = vmatprep.subr.mxu0 0.0
      %838 = vmatpush2.msra.mxu0 0.0
      %839 = vmatprep.subr.mxu0 0.0
      %840 = vmatpush2.msra.mxu0 0.0
      %841 = vmatprep.subr.mxu0 0.0
      %842 = vmatpush2.msra.mxu0 0.0
      %843 = vmatprep.subr.mxu0 0.0
      %844 = vmatpush2.msra.mxu0 0.0
      %845 = vmatprep.subr.mxu0 0.0
      %846 = vmatpush2.msra.mxu0 0.0
      %847 = vmatprep.subr.mxu0 0.0
      %848 = vmatpush2.msra.mxu0 0.0
      %849 = vmatprep.mubr.f32.mxu0 0.0
      %850 = vmatmul.mubr.f32.gmra.mxu0 %v631
      %v851 = vpop.f32.mrf.mxu0
      %v852 = vadd.f32 0.0, %v851
      %v853 = vpop.f32.mrf.mxu0
      %854 = vdwg.mxu0
      %vm855 = vcmask 1043456
      %v856 = vsel %vm855, %v631, 0.0
      %857 = vadd.xlane.f32.xlu0 %v856
      %v858 = vpop.xlane.xlu0 %857
      %v859 = vrcp.pop 128.0
      %v860 = vmul.f32 %v858, %v859
      %vm861 = vcmask 125952
      %v862 = vsel %vm861, %v633, 0.0
      %863 = vadd.xlane.f32.xlu0 %v862
      %v864 = vpop.xlane.xlu0 %863
      %v865 = vrcp.pop 16.0
      %v866 = vmul.f32 %v864, %v865
      %v868 = vcombine.high %v632, %v632
      %vm869 = vcmask 261120
      %v870 = vsel %vm869, %v868, 0
      %872 = vmatprep.subr.mxu0 0.0
      %873 = vmatpush1.msra.mxu0 %v674
      %874 = vmatprep.subr.mxu0 0.0
      %875 = vmatpush1.msra.mxu0 %v673
      %876 = vmatprep.subr.mxu0 0.0
      %877 = vmatpush1.msra.mxu0 %v672
      %878 = vmatprep.subr.mxu0 0.0
      %879 = vmatpush1.msra.mxu0 %v671
      %880 = vmatprep.subr.mxu0 0.0
      %881 = vmatpush1.msra.mxu0 %v670
      %882 = vmatprep.subr.mxu0 0.0
      %883 = vmatpush1.msra.mxu0 %v669
      %884 = vmatprep.subr.mxu0 0.0
      %885 = vmatpush1.msra.mxu0 %v668
      %886 = vmatprep.subr.mxu0 0.0
      %887 = vmatpush1.msra.mxu0 %v667
      %888 = vmatprep.subr.mxu0 0.0
      %889 = vmatpush1.msra.mxu0 %v666
      %890 = vmatprep.subr.mxu0 0.0
      %891 = vmatpush1.msra.mxu0 %v665
      %892 = vmatprep.subr.mxu0 0.0
      %893 = vmatpush1.msra.mxu0 %v664
      %894 = vmatprep.subr.mxu0 0.0
      %895 = vmatpush1.msra.mxu0 %v663
      %896 = vmatprep.subr.mxu0 0.0
      %897 = vmatpush1.msra.mxu0 %v662
      %898 = vmatprep.subr.mxu0 0.0
      %899 = vmatpush1.msra.mxu0 %v661
      %900 = vmatprep.subr.mxu0 0.0
      %901 = vmatpush1.msra.mxu0 %v660
      %902 = vmatprep.subr.mxu0 0.0
      %903 = vmatpush1.msra.mxu0 %v659
      %904 = vmatprep.subr.mxu0 0.0
      %905 = vmatpush2.msra.mxu0 0.0
      %906 = vmatprep.subr.mxu0 0.0
      %907 = vmatpush2.msra.mxu0 0.0
      %908 = vmatprep.subr.mxu0 0.0
      %909 = vmatpush2.msra.mxu0 0.0
      %910 = vmatprep.subr.mxu0 0.0
      %911 = vmatpush2.msra.mxu0 0.0
      %912 = vmatprep.subr.mxu0 0.0
      %913 = vmatpush2.msra.mxu0 0.0
      %914 = vmatprep.subr.mxu0 0.0
      %915 = vmatpush2.msra.mxu0 0.0
      %916 = vmatprep.subr.mxu0 0.0
      %917 = vmatpush2.msra.mxu0 0.0
      %918 = vmatprep.subr.mxu0 0.0
      %919 = vmatpush2.msra.mxu0 0.0
      %920 = vmatprep.subr.mxu0 0.0
      %921 = vmatpush2.msra.mxu0 0.0
      %922 = vmatprep.subr.mxu0 0.0
      %923 = vmatpush2.msra.mxu0 0.0
      %924 = vmatprep.subr.mxu0 0.0
      %925 = vmatpush2.msra.mxu0 0.0
      %926 = vmatprep.subr.mxu0 0.0
      %927 = vmatpush2.msra.mxu0 0.0
      %928 = vmatprep.subr.mxu0 0.0
      %929 = vmatpush2.msra.mxu0 %v678
      %930 = vmatprep.subr.mxu0 0.0
      %931 = vmatpush2.msra.mxu0 %v677
      %932 = vmatprep.subr.mxu0 0.0
      %933 = vmatpush2.msra.mxu0 %v676
      %934 = vmatprep.subr.mxu0 0.0
      %935 = vmatpush2.msra.mxu0 %v675
      %936 = vmatprep.mubr.f32.mxu0 %v870
      %937 = vmatmul.mubr.f32.gmra.mxu0 %v632
      %v938 = vpop.f32.mrf.mxu0
      %v939 = vadd.f32 0.0, %v938
      %v940 = vpop.f32.mrf.mxu0
      %941 = vdwg.mxu0
      %942 = vmatprep.subr.mxu0 0.0
      %943 = vmatpush1.msra.mxu0 %v710
      %944 = vmatprep.subr.mxu0 0.0
      %945 = vmatpush1.msra.mxu0 %v709
      %946 = vmatprep.subr.mxu0 0.0
      %947 = vmatpush1.msra.mxu0 %v708
      %948 = vmatprep.subr.mxu0 0.0
      %949 = vmatpush1.msra.mxu0 %v707
      %950 = vmatprep.subr.mxu0 0.0
      %951 = vmatpush1.msra.mxu0 %v706
      %952 = vmatprep.subr.mxu0 0.0
      %953 = vmatpush1.msra.mxu0 %v705
      %954 = vmatprep.subr.mxu0 0.0
      %955 = vmatpush1.msra.mxu0 %v704
      %956 = vmatprep.subr.mxu0 0.0
      %957 = vmatpush1.msra.mxu0 %v703
      %958 = vmatprep.subr.mxu0 0.0
      %959 = vmatpush1.msra.mxu0 %v702
      %960 = vmatprep.subr.mxu0 0.0
      %961 = vmatpush1.msra.mxu0 %v701
      %962 = vmatprep.subr.mxu0 0.0
      %963 = vmatpush1.msra.mxu0 %v700
      %964 = vmatprep.subr.mxu0 0.0
      %965 = vmatpush1.msra.mxu0 %v699
      %966 = vmatprep.subr.mxu0 0.0
      %967 = vmatpush1.msra.mxu0 %v698
      %968 = vmatprep.subr.mxu0 0.0
      %969 = vmatpush1.msra.mxu0 %v697
      %970 = vmatprep.subr.mxu0 0.0
      %971 = vmatpush1.msra.mxu0 %v696
      %972 = vmatprep.subr.mxu0 0.0
      %973 = vmatpush1.msra.mxu0 %v695
      %974 = vmatprep.subr.mxu0 0.0
      %975 = vmatpush2.msra.mxu0 0.0
      %976 = vmatprep.subr.mxu0 0.0
      %977 = vmatpush2.msra.mxu0 0.0
      %978 = vmatprep.subr.mxu0 0.0
      %979 = vmatpush2.msra.mxu0 0.0
      %980 = vmatprep.subr.mxu0 0.0
      %981 = vmatpush2.msra.mxu0 0.0
      %982 = vmatprep.subr.mxu0 0.0
      %983 = vmatpush2.msra.mxu0 0.0
      %984 = vmatprep.subr.mxu0 0.0
      %985 = vmatpush2.msra.mxu0 0.0
      %986 = vmatprep.subr.mxu0 0.0
      %987 = vmatpush2.msra.mxu0 0.0
      %988 = vmatprep.subr.mxu0 0.0
      %989 = vmatpush2.msra.mxu0 0.0
      %990 = vmatprep.subr.mxu0 0.0
      %991 = vmatpush2.msra.mxu0 0.0
      %992 = vmatprep.subr.mxu0 0.0
      %993 = vmatpush2.msra.mxu0 0.0
      %994 = vmatprep.subr.mxu0 0.0
      %995 = vmatpush2.msra.mxu0 0.0
      %996 = vmatprep.subr.mxu0 0.0
      %997 = vmatpush2.msra.mxu0 0.0
      %998 = vmatprep.subr.mxu0 0.0
      %999 = vmatpush2.msra.mxu0 %v714
      %1000 = vmatprep.subr.mxu0 0.0
      %1001 = vmatpush2.msra.mxu0 %v713
      %1002 = vmatprep.subr.mxu0 0.0
      %1003 = vmatpush2.msra.mxu0 %v712
      %1004 = vmatprep.subr.mxu0 0.0
      %1005 = vmatpush2.msra.mxu0 %v711
      %1006 = vmatprep.mubr.f32.mxu0 %v870
      %1007 = vmatmul.mubr.f32.gmra.mxu0 %v632
      %v1008 = vpop.f32.mrf.mxu0
      %v1009 = vadd.f32 0.0, %v1008
      %v1010 = vpop.f32.mrf.mxu0
      %1011 = vdwg.mxu0
      %v1013 = vsel %vm855, %v632, 0.0
      %vm1014 = vcmask 257024
      %v1015 = vsel %vm1014, %v868, 0.0
      %v1016 = vadd.f32 %v1013, %v1015
      %1017 = vadd.xlane.f32.xlu0 %v1016
      %v1018 = vpop.xlane.xlu0 %1017
      %v1019 = vrcp.pop 160.0
      %v1020 = vmul.f32 %v1018, %v1019
      %vm1021 = vcmask 76800
      %v1022 = vsel %vm1021, %v634, 0.0
      %1023 = vadd.xlane.f32.xlu0 %v1022
      %v1024 = vpop.xlane.xlu0 %1023
      %v1025 = vrcp.pop 10.0
      %v1026 = vmul.f32 %v1024, %v1025
      %v1028 = vrot.slane %v1020, 4
      %v1031 = vrot.slane %v1026, 4
      %v1033 = vsel %vm855, %v860, %v1028
      %v1034 = vsel %vm855, %v866, %v1031
      %1036 = vset.pattern.permute.xlu0 0
      %1037 = vperm.xlu0 %1036, %v1033
      %v1038 = vpop.permute.xlu0 %1037
      %1040 = vset.pattern.permute.xlu0 0
      %1041 = vperm.xlu0 %1040, %v1034
      %v1042 = vpop.permute.xlu0 %1041
      %1044 = vset.pattern.permute.xlu0 0
      %1045 = vperm.xlu0 %1044, 1.0
      %v1046 = vpop.permute.xlu0 %1045
      %v1048 = vrot.slane %v633, 4
      %v1050 = vrot.slane %v1038, 4
      %v1051 = vrot.slane %v1042, 4
      %v1052 = vsel %vm855, %v1050, %v1051
      %v1053 = vrot.slane %v1046, 4
      %v1054 = vsel %vm855, %v1051, %v1053
      %v1057 = vsel %vm855, %v852, %v1048
      %v1058 = vsel %vm855, %v939, %v1050
      %vm1059 = vcmask 31744
      %v1061 = vsel %vm1059, %v637, 0
      %v1064 = vsel %vm855, %v782, 0
      %1066 = vmatprep.subr.mxu0 0.0
      %1067 = vmatpush1.msra.mxu0 0.0
      %1068 = vmatprep.subr.mxu0 0.0
      %1069 = vmatpush1.msra.mxu0 0.0
      %1070 = vmatprep.subr.mxu0 0.0
      %1071 = vmatpush1.msra.mxu0 0.0
      %1072 = vmatprep.subr.mxu0 0.0
      %1073 = vmatpush1.msra.mxu0 0.0
      %1074 = vmatprep.subr.mxu0 0.0
      %1075 = vmatpush1.msra.mxu0 0.0
      %1076 = vmatprep.subr.mxu0 0.0
      %1077 = vmatpush1.msra.mxu0 0.0
      %1078 = vmatprep.subr.mxu0 0.0
      %1079 = vmatpush1.msra.mxu0 0.0
      %1080 = vmatprep.subr.mxu0 0.0
      %1081 = vmatpush1.msra.mxu0 0.0
      %1082 = vmatprep.subr.mxu0 0.0
      %1083 = vmatpush1.msra.mxu0 0.0
      %1084 = vmatprep.subr.mxu0 0.0
      %1085 = vmatpush1.msra.mxu0 0.0
      %1086 = vmatprep.subr.mxu0 0.0
      %1087 = vmatpush1.msra.mxu0 0.0
      %1088 = vmatprep.subr.mxu0 0.0
      %1089 = vmatpush1.msra.mxu0 0.0
      %1090 = vmatprep.subr.mxu0 0.0
      %1091 = vmatpush1.msra.mxu0 0.0
      %1092 = vmatprep.subr.mxu0 0.0
      %1093 = vmatpush1.msra.mxu0 0.0
      %1094 = vmatprep.subr.mxu0 0.0
      %1095 = vmatpush1.msra.mxu0 0.0
      %1096 = vmatprep.subr.mxu0 0.0
      %1097 = vmatpush1.msra.mxu0 %v1064
      %1098 = vmatprep.subr.mxu0 0.0
      %1099 = vmatpush2.msra.mxu0 0.0
      %1100 = vmatprep.subr.mxu0 0.0
      %1101 = vmatpush2.msra.mxu0 0.0
      %1102 = vmatprep.subr.mxu0 0.0
      %1103 = vmatpush2.msra.mxu0 0.0
      %1104 = vmatprep.subr.mxu0 0.0
      %1105 = vmatpush2.msra.mxu0 0.0
      %1106 = vmatprep.subr.mxu0 0.0
      %1107 = vmatpush2.msra.mxu0 0.0
      %1108 = vmatprep.subr.mxu0 0.0
      %1109 = vmatpush2.msra.mxu0 0.0
      %1110 = vmatprep.subr.mxu0 0.0
      %1111 = vmatpush2.msra.mxu0 0.0
      %1112 = vmatprep.subr.mxu0 0.0
      %1113 = vmatpush2.msra.mxu0 0.0
      %1114 = vmatprep.subr.mxu0 0.0
      %1115 = vmatpush2.msra.mxu0 0.0
      %1116 = vmatprep.subr.mxu0 0.0
      %1117 = vmatpush2.msra.mxu0 0.0
      %1118 = vmatprep.subr.mxu0 0.0
      %1119 = vmatpush2.msra.mxu0 0.0
      %1120 = vmatprep.subr.mxu0 0.0
      %1121 = vmatpush2.msra.mxu0 0.0
      %1122 = vmatprep.subr.mxu0 0.0
      %1123 = vmatpush2.msra.mxu0 0.0
      %1124 = vmatprep.subr.mxu0 0.0
      %1125 = vmatpush2.msra.mxu0 0.0
      %1126 = vmatprep.subr.mxu0 0.0
      %1127 = vmatpush2.msra.mxu0 0.0
      %1128 = vmatprep.subr.mxu0 0.0
      %1129 = vmatpush2.msra.mxu0 0.0
      %1130 = vmatprep.mubr.f32.mxu0 0.0
      %1131 = vmatmul.mubr.f32.gmra.mxu0 %v1061
      %v1132 = vpop.f32.mrf.mxu0
      %v1133 = vadd.f32 0.0, %v1132
      %v1134 = vpop.f32.mrf.mxu0
      %1135 = vdwg.mxu0
      %vm1136 = vcmask 236544
      %v1138 = vsel %vm1136, %v639, 0
      %v1141 = vsel %vm1136, %v640, 0
      %vm1143 = vcmask 1044480
      %v1144 = vsel %vm1143, %v1054, 0
      %1146 = vmatprep.subr.mxu0 0.0
      %1147 = vmatpush1.msra.mxu0 0.0
      %1148 = vmatprep.subr.mxu0 0.0
      %1149 = vmatpush1.msra.mxu0 0.0
      %1150 = vmatprep.subr.mxu0 0.0
      %1151 = vmatpush1.msra.mxu0 0.0
      %1152 = vmatprep.subr.mxu0 0.0
      %1153 = vmatpush1.msra.mxu0 0.0
      %1154 = vmatprep.subr.mxu0 0.0
      %1155 = vmatpush1.msra.mxu0 0.0
      %1156 = vmatprep.subr.mxu0 0.0
      %1157 = vmatpush1.msra.mxu0 0.0
      %1158 = vmatprep.subr.mxu0 0.0
      %1159 = vmatpush1.msra.mxu0 0.0
      %1160 = vmatprep.subr.mxu0 0.0
      %1161 = vmatpush1.msra.mxu0 0.0
      %1162 = vmatprep.subr.mxu0 0.0
      %1163 = vmatpush1.msra.mxu0 0.0
      %1164 = vmatprep.subr.mxu0 0.0
      %1165 = vmatpush1.msra.mxu0 0.0
      %1166 = vmatprep.subr.mxu0 0.0
      %1167 = vmatpush1.msra.mxu0 0.0
      %1168 = vmatprep.subr.mxu0 0.0
      %1169 = vmatpush1.msra.mxu0 0.0
      %1170 = vmatprep.subr.mxu0 0.0
      %1171 = vmatpush1.msra.mxu0 %v1144
      %1172 = vmatprep.subr.mxu0 0.0
      %1173 = vmatpush1.msra.mxu0 %v1052
      %1174 = vmatprep.subr.mxu0 0.0
      %1175 = vmatpush1.msra.mxu0 %v1058
      %1176 = vmatprep.subr.mxu0 0.0
      %1177 = vmatpush1.msra.mxu0 %v1057
      %1178 = vmatprep.subr.mxu0 0.0
      %1179 = vmatpush2.msra.mxu0 0.0
      %1180 = vmatprep.subr.mxu0 0.0
      %1181 = vmatpush2.msra.mxu0 0.0
      %1182 = vmatprep.subr.mxu0 0.0
      %1183 = vmatpush2.msra.mxu0 0.0
      %1184 = vmatprep.subr.mxu0 0.0
      %1185 = vmatpush2.msra.mxu0 0.0
      %1186 = vmatprep.subr.mxu0 0.0
      %1187 = vmatpush2.msra.mxu0 0.0
      %1188 = vmatprep.subr.mxu0 0.0
      %1189 = vmatpush2.msra.mxu0 0.0
      %1190 = vmatprep.subr.mxu0 0.0
      %1191 = vmatpush2.msra.mxu0 0.0
      %1192 = vmatprep.subr.mxu0 0.0
      %1193 = vmatpush2.msra.mxu0 0.0
      %1194 = vmatprep.subr.mxu0 0.0
      %1195 = vmatpush2.msra.mxu0 0.0
      %1196 = vmatprep.subr.mxu0 0.0
      %1197 = vmatpush2.msra.mxu0 0.0
      %1198 = vmatprep.subr.mxu0 0.0
      %1199 = vmatpush2.msra.mxu0 0.0
      %1200 = vmatprep.subr.mxu0 0.0
      %1201 = vmatpush2.msra.mxu0 0.0
      %1202 = vmatprep.subr.mxu0 0.0
      %1203 = vmatpush2.msra.mxu0 0.0
      %1204 = vmatprep.subr.mxu0 0.0
      %1205 = vmatpush2.msra.mxu0 0.0
      %1206 = vmatprep.subr.mxu0 0.0
      %1207 = vmatpush2.msra.mxu0 0.0
      %1208 = vmatprep.subr.mxu0 0.0
      %1209 = vmatpush2.msra.mxu0 0.0
      %1210 = vmatprep.mubr.f32.mxu0 0.0
      %1211 = vmatmul.mubr.f32.gmra.mxu0 %v1138
      %v1212 = vpop.f32.mrf.mxu0
      %v1213 = vadd.f32 0.0, %v1212
      %v1214 = vpop.f32.mrf.mxu0
      %1215 = vmatprep.mubr.f32.mxu0 0.0
      %1216 = vmatmul.mubr.f32.gmra.mxu0 %v1141
      %v1217 = vpop.f32.mrf.mxu0
      %v1218 = vadd.f32 0.0, %v1217
      %v1219 = vpop.f32.mrf.mxu0
      %1220 = vdwg.mxu0
      %v1222 = vcombine.high %v1133, %v1133
      %v1224 = vunpack.c.l.s4 1966171168
      %v1225 = vunpack.c.0.s8 %v1224
      %v1226 = vlaneseq
      %v1227 = vshrl.u32 %v1226, 7
      %v1228 = vsub.s32 %v1225, %v1227
      %v1229 = vrot.slane %v1133, %v1228
      %v1231 = vunpack.c.l.s4 1966171168
      %v1232 = vunpack.c.0.s8 %v1231
      %v1233 = vlaneseq
      %v1234 = vshrl.u32 %v1233, 7
      %v1235 = vsub.s32 %v1232, %v1234
      %v1236 = vrot.slane %v1222, %v1235
      %v1237 = vcombine.high %v1229, %v1229
      %v1238 = vcombine.high %v1236, %v1236
      %v1240 = vunpack.c.l.s4 1966171168
      %v1241 = vunpack.c.0.s8 %v1240
      %v1242 = vlaneseq
      %v1243 = vshrl.u32 %v1242, 7
      %v1244 = vsub.s32 %v1241, %v1243
      %v1245 = vrot.slane %v1229, %v1244
      %v1247 = vunpack.c.l.s4 1966171168
      %v1248 = vunpack.c.0.s8 %v1247
      %v1249 = vlaneseq
      %v1250 = vshrl.u32 %v1249, 7
      %v1251 = vsub.s32 %v1248, %v1250
      %v1252 = vrot.slane %v1236, %v1251
      %v1254 = vunpack.c.l.s4 1966171168
      %v1255 = vunpack.c.0.s8 %v1254
      %v1256 = vlaneseq
      %v1257 = vshrl.u32 %v1256, 7
      %v1258 = vsub.s32 %v1255, %v1257
      %v1259 = vrot.slane %v1237, %v1258
      %v1261 = vunpack.c.l.s4 1966171168
      %v1262 = vunpack.c.0.s8 %v1261
      %v1263 = vlaneseq
      %v1264 = vshrl.u32 %v1263, 7
      %v1265 = vsub.s32 %v1262, %v1264
      %v1266 = vrot.slane %v1238, %v1265
      %v1267 = vcombine.high %v1245, %v1245
      %v1268 = vcombine.high %v1259, %v1259
      %v1269 = vlaneseq
      %v1270 = vshrl.u32 %v1269, 7
      %v1271 = vsub.s32 0, %v1270
      %v1272 = vrot.slane %v1245, %v1271
      %v1273 = vlaneseq
      %v1274 = vshrl.u32 %v1273, 7
      %v1275 = vsub.s32 0, %v1274
      %v1276 = vrot.slane %v1259, %v1275
      %v1277 = vlaneseq
      %v1278 = vshrl.u32 %v1277, 7
      %v1279 = vsub.s32 0, %v1278
      %v1280 = vrot.slane %v1267, %v1279
      %v1281 = vlaneseq
      %v1282 = vshrl.u32 %v1281, 7
      %v1283 = vsub.s32 0, %v1282
      %v1284 = vrot.slane %v1268, %v1283
      %v1285 = vlaneseq
      %v1286 = vshrl.u32 %v1285, 7
      %v1287 = vsub.s32 0, %v1286
      %v1288 = vrot.slane %v1252, %v1287
      %v1289 = vlaneseq
      %v1290 = vshrl.u32 %v1289, 7
      %v1291 = vsub.s32 0, %v1290
      %v1292 = vrot.slane %v1266, %v1291
      %v1299 = vcombine.low %v1272, %v1280
      %v1300 = vcombine.high %v1272, %v1280
      %v1302 = vunpack.c.l.s4 1983009808
      %v1303 = vunpack.c.0.s8 %v1302
      %v1304 = vlaneseq
      %v1305 = vshrl.u32 %v1304, 7
      %v1306 = vsub.s32 %v1303, %v1305
      %v1307 = vrot.slane %v1299, %v1306
      %v1309 = vunpack.c.l.s4 1983009808
      %v1310 = vunpack.c.0.s8 %v1309
      %v1311 = vlaneseq
      %v1312 = vshrl.u32 %v1311, 7
      %v1313 = vsub.s32 %v1310, %v1312
      %v1314 = vrot.slane %v1300, %v1313
      %v1315 = vcombine.low %v1276, %v1284
      %v1316 = vcombine.high %v1276, %v1284
      %v1318 = vunpack.c.l.s4 1983009808
      %v1319 = vunpack.c.0.s8 %v1318
      %v1320 = vlaneseq
      %v1321 = vshrl.u32 %v1320, 7
      %v1322 = vsub.s32 %v1319, %v1321
      %v1323 = vrot.slane %v1315, %v1322
      %v1325 = vunpack.c.l.s4 1983009808
      %v1326 = vunpack.c.0.s8 %v1325
      %v1327 = vlaneseq
      %v1328 = vshrl.u32 %v1327, 7
      %v1329 = vsub.s32 %v1326, %v1328
      %v1330 = vrot.slane %v1316, %v1329
      %v1331 = vcombine.high %v1288, 0.0
      %v1333 = vunpack.c.l.s4 1983009808
      %v1334 = vunpack.c.0.s8 %v1333
      %v1335 = vlaneseq
      %v1336 = vshrl.u32 %v1335, 7
      %v1337 = vsub.s32 %v1334, %v1336
      %v1338 = vrot.slane %v1288, %v1337
      %v1340 = vunpack.c.l.s4 1983009808
      %v1341 = vunpack.c.0.s8 %v1340
      %v1342 = vlaneseq
      %v1343 = vshrl.u32 %v1342, 7
      %v1344 = vsub.s32 %v1341, %v1343
      %v1345 = vrot.slane %v1331, %v1344
      %v1346 = vcombine.high %v1292, 0.0
      %v1348 = vunpack.c.l.s4 1983009808
      %v1349 = vunpack.c.0.s8 %v1348
      %v1350 = vlaneseq
      %v1351 = vshrl.u32 %v1350, 7
      %v1352 = vsub.s32 %v1349, %v1351
      %v1353 = vrot.slane %v1292, %v1352
      %v1355 = vunpack.c.l.s4 1983009808
      %v1356 = vunpack.c.0.s8 %v1355
      %v1357 = vlaneseq
      %v1358 = vshrl.u32 %v1357, 7
      %v1359 = vsub.s32 %v1356, %v1358
      %v1360 = vrot.slane %v1346, %v1359
      %v1361 = vcombine.low %v1307, %v1323
      %v1362 = vcombine.high %v1307, %v1323
      %v1364 = vunpack.c.l.s4 1934713408
      %v1365 = vunpack.c.0.s8 %v1364
      %v1366 = vlaneseq
      %v1367 = vshrl.u32 %v1366, 7
      %v1368 = vsub.s32 %v1365, %v1367
      %v1369 = vrot.slane %v1361, %v1368
      %v1371 = vunpack.c.l.s4 1934713408
      %v1372 = vunpack.c.0.s8 %v1371
      %v1373 = vlaneseq
      %v1374 = vshrl.u32 %v1373, 7
      %v1375 = vsub.s32 %v1372, %v1374
      %v1376 = vrot.slane %v1362, %v1375
      %v1377 = vcombine.low %v1314, %v1330
      %v1378 = vcombine.high %v1314, %v1330
      %v1380 = vunpack.c.l.s4 1934713408
      %v1381 = vunpack.c.0.s8 %v1380
      %v1382 = vlaneseq
      %v1383 = vshrl.u32 %v1382, 7
      %v1384 = vsub.s32 %v1381, %v1383
      %v1385 = vrot.slane %v1377, %v1384
      %v1387 = vunpack.c.l.s4 1934713408
      %v1388 = vunpack.c.0.s8 %v1387
      %v1389 = vlaneseq
      %v1390 = vshrl.u32 %v1389, 7
      %v1391 = vsub.s32 %v1388, %v1390
      %v1392 = vrot.slane %v1378, %v1391
      %v1393 = vcombine.low %v1338, %v1353
      %v1394 = vcombine.high %v1338, %v1353
      %v1396 = vunpack.c.l.s4 1934713408
      %v1397 = vunpack.c.0.s8 %v1396
      %v1398 = vlaneseq
      %v1399 = vshrl.u32 %v1398, 7
      %v1400 = vsub.s32 %v1397, %v1399
      %v1401 = vrot.slane %v1393, %v1400
      %v1403 = vunpack.c.l.s4 1934713408
      %v1404 = vunpack.c.0.s8 %v1403
      %v1405 = vlaneseq
      %v1406 = vshrl.u32 %v1405, 7
      %v1407 = vsub.s32 %v1404, %v1406
      %v1408 = vrot.slane %v1394, %v1407
      %v1409 = vcombine.low %v1345, %v1360
      %v1410 = vcombine.high %v1345, %v1360
      %v1412 = vunpack.c.l.s4 1934713408
      %v1413 = vunpack.c.0.s8 %v1412
      %v1414 = vlaneseq
      %v1415 = vshrl.u32 %v1414, 7
      %v1416 = vsub.s32 %v1413, %v1415
      %v1417 = vrot.slane %v1409, %v1416
      %v1419 = vunpack.c.l.s4 1934713408
      %v1420 = vunpack.c.0.s8 %v1419
      %v1421 = vlaneseq
      %v1422 = vshrl.u32 %v1421, 7
      %v1423 = vsub.s32 %v1420, %v1422
      %v1424 = vrot.slane %v1410, %v1423
      %v1425 = vcombine.low %v1369, %v1401
      %v1426 = vcombine.high %v1369, %v1401
      %v1427 = vcombine.low %v1376, %v1408
      %v1428 = vcombine.high %v1376, %v1408
      %v1429 = vcombine.low %v1385, %v1417
      %v1430 = vcombine.high %v1385, %v1417
      %v1431 = vcombine.low %v1392, %v1424
      %v1432 = vcombine.high %v1392, %v1424
      %1434 = vrot.lane.b32.xlu0 %v1426, 8
      %v1435 = vpop.permute.xlu0 %1434
      %1438 = vrot.lane.b32.xlu0 %v1427, 16
      %v1439 = vpop.permute.xlu0 %1438
      %1442 = vrot.lane.b32.xlu0 %v1428, 24
      %v1443 = vpop.permute.xlu0 %1442
      %1446 = vrot.lane.b32.xlu0 %v1429, 32
      %v1447 = vpop.permute.xlu0 %1446
      %1450 = vrot.lane.b32.xlu0 %v1430, 40
      %v1451 = vpop.permute.xlu0 %1450
      %1454 = vrot.lane.b32.xlu0 %v1431, 48
      %v1455 = vpop.permute.xlu0 %1454
      %1458 = vrot.lane.b32.xlu0 %v1432, 56
      %v1459 = vpop.permute.xlu0 %1458
      %1462 = vrot.lane.b32.xlu0 %v1425, 64
      %v1463 = vpop.permute.xlu0 %1462
      %1465 = vrot.lane.b32.xlu0 %v1426, 72
      %v1466 = vpop.permute.xlu0 %1465
      %1468 = vrot.lane.b32.xlu0 %v1427, 80
      %v1469 = vpop.permute.xlu0 %1468
      %1471 = vrot.lane.b32.xlu0 %v1428, 88
      %v1472 = vpop.permute.xlu0 %1471
      %1474 = vrot.lane.b32.xlu0 %v1429, 96
      %v1475 = vpop.permute.xlu0 %1474
      %1477 = vrot.lane.b32.xlu0 %v1430, 104
      %v1478 = vpop.permute.xlu0 %1477
      %1480 = vrot.lane.b32.xlu0 %v1431, 112
      %v1481 = vpop.permute.xlu0 %1480
      %1483 = vrot.lane.b32.xlu0 %v1432, 120
      %v1484 = vpop.permute.xlu0 %1483
      %vm1486 = vcmask 64512
      %v1487 = vsel %vm1486, %v1425, %v1435
      %vm1488 = vcmask 130048
      %v1489 = vsel %vm1488, %v1487, %v1439
      %vm1490 = vcmask 195584
      %v1491 = vsel %vm1490, %v1489, %v1443
      %v1492 = vsel %vm869, %v1491, %v1447
      %vm1493 = vcmask 326656
      %v1494 = vsel %vm1493, %v1492, %v1451
      %vm1495 = vcmask 392192
      %v1496 = vsel %vm1495, %v1494, %v1455
      %vm1497 = vcmask 457728
      %v1498 = vsel %vm1497, %v1496, %v1459
      %vm1499 = vcmask 523264
      %v1500 = vsel %vm1499, %v1498, %v1463
      %vm1501 = vcmask 588800
      %v1502 = vsel %vm1501, %v1500, %v1466
      %vm1503 = vcmask 654336
      %v1504 = vsel %vm1503, %v1502, %v1469
      %vm1505 = vcmask 719872
      %v1506 = vsel %vm1505, %v1504, %v1472
      %vm1507 = vcmask 785408
      %v1508 = vsel %vm1507, %v1506, %v1475
      %vm1509 = vcmask 850944
      %v1510 = vsel %vm1509, %v1508, %v1478
      %vm1511 = vcmask 916480
      %v1512 = vsel %vm1511, %v1510, %v1481
      %vm1513 = vcmask 982016
      %v1514 = vsel %vm1513, %v1512, %v1484
      %v1515 = vlaneseq
      %v1516 = vshrl.u32 %v1515, 7
      %v1517 = vsub.s32 0, %v1516
      %v1518 = vrot.slane %v1213, %v1517
      %1520 = vbcast.lane.b32.xlu0 %v1518, 256
      %v1521 = vpop.permute.xlu0 %1520
      %s1523 = sor.u32 256, 8
      %1524 = vbcast.lane.b32.xlu0 %v1518, %s1523
      %v1525 = vpop.permute.xlu0 %1524
      %v1526 = vlaneseq
      %v1527 = vshrl.u32 %v1526, 7
      %v1528 = vsub.s32 1, %v1527
      %v1529 = vrot.slane %v1213, %v1528
      %1531 = vbcast.lane.b32.xlu0 %v1529, 256
      %v1532 = vpop.permute.xlu0 %1531
      %s1534 = sor.u32 256, 8
      %1535 = vbcast.lane.b32.xlu0 %v1529, %s1534
      %v1536 = vpop.permute.xlu0 %1535
      %v1537 = vlaneseq
      %v1538 = vshrl.u32 %v1537, 7
      %v1539 = vsub.s32 2, %v1538
      %v1540 = vrot.slane %v1213, %v1539
      %1542 = vbcast.lane.b32.xlu0 %v1540, 256
      %v1543 = vpop.permute.xlu0 %1542
      %s1545 = sor.u32 256, 8
      %1546 = vbcast.lane.b32.xlu0 %v1540, %s1545
      %v1547 = vpop.permute.xlu0 %1546
      %v1548 = vlaneseq
      %v1549 = vshrl.u32 %v1548, 7
      %v1550 = vsub.s32 3, %v1549
      %v1551 = vrot.slane %v1213, %v1550
      %1553 = vbcast.lane.b32.xlu0 %v1551, 256
      %v1554 = vpop.permute.xlu0 %1553
      %s1556 = sor.u32 256, 8
      %1557 = vbcast.lane.b32.xlu0 %v1551, %s1556
      %v1558 = vpop.permute.xlu0 %1557
      %v1559 = vlaneseq
      %v1560 = vshrl.u32 %v1559, 7
      %v1561 = vsub.s32 4, %v1560
      %v1562 = vrot.slane %v1213, %v1561
      %1564 = vbcast.lane.b32.xlu0 %v1562, 256
      %v1565 = vpop.permute.xlu0 %1564
      %s1567 = sor.u32 256, 8
      %1568 = vbcast.lane.b32.xlu0 %v1562, %s1567
      %v1569 = vpop.permute.xlu0 %1568
      %v1570 = vlaneseq
      %v1571 = vshrl.u32 %v1570, 7
      %v1572 = vsub.s32 5, %v1571
      %v1573 = vrot.slane %v1213, %v1572
      %1575 = vbcast.lane.b32.xlu0 %v1573, 256
      %v1576 = vpop.permute.xlu0 %1575
      %s1578 = sor.u32 256, 8
      %1579 = vbcast.lane.b32.xlu0 %v1573, %s1578
      %v1580 = vpop.permute.xlu0 %1579
      %v1581 = vcombine.low %v1521, %v1543
      %v1582 = vcombine.high %v1521, %v1543
      %v1584 = vunpack.c.l.s4 1983009808
      %v1585 = vunpack.c.0.s8 %v1584
      %v1586 = vlaneseq
      %v1587 = vshrl.u32 %v1586, 7
      %v1588 = vsub.s32 %v1585, %v1587
      %v1589 = vrot.slane %v1581, %v1588
      %v1591 = vunpack.c.l.s4 1983009808
      %v1592 = vunpack.c.0.s8 %v1591
      %v1593 = vlaneseq
      %v1594 = vshrl.u32 %v1593, 7
      %v1595 = vsub.s32 %v1592, %v1594
      %v1596 = vrot.slane %v1582, %v1595
      %v1597 = vcombine.low %v1532, %v1554
      %v1598 = vcombine.high %v1532, %v1554
      %v1600 = vunpack.c.l.s4 1983009808
      %v1601 = vunpack.c.0.s8 %v1600
      %v1602 = vlaneseq
      %v1603 = vshrl.u32 %v1602, 7
      %v1604 = vsub.s32 %v1601, %v1603
      %v1605 = vrot.slane %v1597, %v1604
      %v1607 = vunpack.c.l.s4 1983009808
      %v1608 = vunpack.c.0.s8 %v1607
      %v1609 = vlaneseq
      %v1610 = vshrl.u32 %v1609, 7
      %v1611 = vsub.s32 %v1608, %v1610
      %v1612 = vrot.slane %v1598, %v1611
      %v1613 = vcombine.high %v1565, 0.0
      %v1615 = vunpack.c.l.s4 1983009808
      %v1616 = vunpack.c.0.s8 %v1615
      %v1617 = vlaneseq
      %v1618 = vshrl.u32 %v1617, 7
      %v1619 = vsub.s32 %v1616, %v1618
      %v1620 = vrot.slane %v1565, %v1619
      %v1622 = vunpack.c.l.s4 1983009808
      %v1623 = vunpack.c.0.s8 %v1622
      %v1624 = vlaneseq
      %v1625 = vshrl.u32 %v1624, 7
      %v1626 = vsub.s32 %v1623, %v1625
      %v1627 = vrot.slane %v1613, %v1626
      %v1628 = vcombine.high %v1576, 0.0
      %v1630 = vunpack.c.l.s4 1983009808
      %v1631 = vunpack.c.0.s8 %v1630
      %v1632 = vlaneseq
      %v1633 = vshrl.u32 %v1632, 7
      %v1634 = vsub.s32 %v1631, %v1633
      %v1635 = vrot.slane %v1576, %v1634
      %v1637 = vunpack.c.l.s4 1983009808
      %v1638 = vunpack.c.0.s8 %v1637
      %v1639 = vlaneseq
      %v1640 = vshrl.u32 %v1639, 7
      %v1641 = vsub.s32 %v1638, %v1640
      %v1642 = vrot.slane %v1628, %v1641
      %v1643 = vcombine.low %v1589, %v1605
      %v1644 = vcombine.high %v1589, %v1605
      %v1646 = vunpack.c.l.s4 1934713408
      %v1647 = vunpack.c.0.s8 %v1646
      %v1648 = vlaneseq
      %v1649 = vshrl.u32 %v1648, 7
      %v1650 = vsub.s32 %v1647, %v1649
      %v1651 = vrot.slane %v1643, %v1650
      %v1653 = vunpack.c.l.s4 1934713408
      %v1654 = vunpack.c.0.s8 %v1653
      %v1655 = vlaneseq
      %v1656 = vshrl.u32 %v1655, 7
      %v1657 = vsub.s32 %v1654, %v1656
      %v1658 = vrot.slane %v1644, %v1657
      %v1659 = vcombine.low %v1596, %v1612
      %v1660 = vcombine.high %v1596, %v1612
      %v1662 = vunpack.c.l.s4 1934713408
      %v1663 = vunpack.c.0.s8 %v1662
      %v1664 = vlaneseq
      %v1665 = vshrl.u32 %v1664, 7
      %v1666 = vsub.s32 %v1663, %v1665
      %v1667 = vrot.slane %v1659, %v1666
      %v1669 = vunpack.c.l.s4 1934713408
      %v1670 = vunpack.c.0.s8 %v1669
      %v1671 = vlaneseq
      %v1672 = vshrl.u32 %v1671, 7
      %v1673 = vsub.s32 %v1670, %v1672
      %v1674 = vrot.slane %v1660, %v1673
      %v1675 = vcombine.low %v1620, %v1635
      %v1676 = vcombine.high %v1620, %v1635
      %v1678 = vunpack.c.l.s4 1934713408
      %v1679 = vunpack.c.0.s8 %v1678
      %v1680 = vlaneseq
      %v1681 = vshrl.u32 %v1680, 7
      %v1682 = vsub.s32 %v1679, %v1681
      %v1683 = vrot.slane %v1675, %v1682
      %v1685 = vunpack.c.l.s4 1934713408
      %v1686 = vunpack.c.0.s8 %v1685
      %v1687 = vlaneseq
      %v1688 = vshrl.u32 %v1687, 7
      %v1689 = vsub.s32 %v1686, %v1688
      %v1690 = vrot.slane %v1676, %v1689
      %v1691 = vcombine.low %v1627, %v1642
      %v1692 = vcombine.high %v1627, %v1642
      %v1694 = vunpack.c.l.s4 1934713408
      %v1695 = vunpack.c.0.s8 %v1694
      %v1696 = vlaneseq
      %v1697 = vshrl.u32 %v1696, 7
      %v1698 = vsub.s32 %v1695, %v1697
      %v1699 = vrot.slane %v1691, %v1698
      %v1701 = vunpack.c.l.s4 1934713408
      %v1702 = vunpack.c.0.s8 %v1701
      %v1703 = vlaneseq
      %v1704 = vshrl.u32 %v1703, 7
      %v1705 = vsub.s32 %v1702, %v1704
      %v1706 = vrot.slane %v1692, %v1705
      %v1707 = vcombine.low %v1651, %v1683
      %v1708 = vcombine.high %v1651, %v1683
      %v1709 = vcombine.low %v1658, %v1690
      %v1710 = vcombine.high %v1658, %v1690
      %v1711 = vcombine.low %v1667, %v1699
      %v1712 = vcombine.high %v1667, %v1699
      %v1713 = vcombine.low %v1674, %v1706
      %v1714 = vcombine.high %v1674, %v1706
      %v1715 = vcombine.low %v1525, %v1547
      %v1716 = vcombine.high %v1525, %v1547
      %v1718 = vunpack.c.l.s4 1983009808
      %v1719 = vunpack.c.0.s8 %v1718
      %v1720 = vlaneseq
      %v1721 = vshrl.u32 %v1720, 7
      %v1722 = vsub.s32 %v1719, %v1721
      %v1723 = vrot.slane %v1715, %v1722
      %v1725 = vunpack.c.l.s4 1983009808
      %v1726 = vunpack.c.0.s8 %v1725
      %v1727 = vlaneseq
      %v1728 = vshrl.u32 %v1727, 7
      %v1729 = vsub.s32 %v1726, %v1728
      %v1730 = vrot.slane %v1716, %v1729
      %v1731 = vcombine.low %v1536, %v1558
      %v1732 = vcombine.high %v1536, %v1558
      %v1734 = vunpack.c.l.s4 1983009808
      %v1735 = vunpack.c.0.s8 %v1734
      %v1736 = vlaneseq
      %v1737 = vshrl.u32 %v1736, 7
      %v1738 = vsub.s32 %v1735, %v1737
      %v1739 = vrot.slane %v1731, %v1738
      %v1741 = vunpack.c.l.s4 1983009808
      %v1742 = vunpack.c.0.s8 %v1741
      %v1743 = vlaneseq
      %v1744 = vshrl.u32 %v1743, 7
      %v1745 = vsub.s32 %v1742, %v1744
      %v1746 = vrot.slane %v1732, %v1745
      %v1747 = vcombine.high %v1569, 0.0
      %v1749 = vunpack.c.l.s4 1983009808
      %v1750 = vunpack.c.0.s8 %v1749
      %v1751 = vlaneseq
      %v1752 = vshrl.u32 %v1751, 7
      %v1753 = vsub.s32 %v1750, %v1752
      %v1754 = vrot.slane %v1569, %v1753
      %v1756 = vunpack.c.l.s4 1983009808
      %v1757 = vunpack.c.0.s8 %v1756
      %v1758 = vlaneseq
      %v1759 = vshrl.u32 %v1758, 7
      %v1760 = vsub.s32 %v1757, %v1759
      %v1761 = vrot.slane %v1747, %v1760
      %v1762 = vcombine.high %v1580, 0.0
      %v1764 = vunpack.c.l.s4 1983009808
      %v1765 = vunpack.c.0.s8 %v1764
      %v1766 = vlaneseq
      %v1767 = vshrl.u32 %v1766, 7
      %v1768 = vsub.s32 %v1765, %v1767
      %v1769 = vrot.slane %v1580, %v1768
      %v1771 = vunpack.c.l.s4 1983009808
      %v1772 = vunpack.c.0.s8 %v1771
      %v1773 = vlaneseq
      %v1774 = vshrl.u32 %v1773, 7
      %v1775 = vsub.s32 %v1772, %v1774
      %v1776 = vrot.slane %v1762, %v1775
      %v1777 = vcombine.low %v1723, %v1739
      %v1778 = vcombine.high %v1723, %v1739
      %v1780 = vunpack.c.l.s4 1934713408
      %v1781 = vunpack.c.0.s8 %v1780
      %v1782 = vlaneseq
      %v1783 = vshrl.u32 %v1782, 7
      %v1784 = vsub.s32 %v1781, %v1783
      %v1785 = vrot.slane %v1777, %v1784
      %v1787 = vunpack.c.l.s4 1934713408
      %v1788 = vunpack.c.0.s8 %v1787
      %v1789 = vlaneseq
      %v1790 = vshrl.u32 %v1789, 7
      %v1791 = vsub.s32 %v1788, %v1790
      %v1792 = vrot.slane %v1778, %v1791
      %v1793 = vcombine.low %v1730, %v1746
      %v1794 = vcombine.high %v1730, %v1746
      %v1796 = vunpack.c.l.s4 1934713408
      %v1797 = vunpack.c.0.s8 %v1796
      %v1798 = vlaneseq
      %v1799 = vshrl.u32 %v1798, 7
      %v1800 = vsub.s32 %v1797, %v1799
      %v1801 = vrot.slane %v1793, %v1800
      %v1803 = vunpack.c.l.s4 1934713408
      %v1804 = vunpack.c.0.s8 %v1803
      %v1805 = vlaneseq
      %v1806 = vshrl.u32 %v1805, 7
      %v1807 = vsub.s32 %v1804, %v1806
      %v1808 = vrot.slane %v1794, %v1807
      %v1809 = vcombine.low %v1754, %v1769
      %v1810 = vcombine.high %v1754, %v1769
      %v1812 = vunpack.c.l.s4 1934713408
      %v1813 = vunpack.c.0.s8 %v1812
      %v1814 = vlaneseq
      %v1815 = vshrl.u32 %v1814, 7
      %v1816 = vsub.s32 %v1813, %v1815
      %v1817 = vrot.slane %v1809, %v1816
      %v1819 = vunpack.c.l.s4 1934713408
      %v1820 = vunpack.c.0.s8 %v1819
      %v1821 = vlaneseq
      %v1822 = vshrl.u32 %v1821, 7
      %v1823 = vsub.s32 %v1820, %v1822
      %v1824 = vrot.slane %v1810, %v1823
      %v1825 = vcombine.low %v1761, %v1776
      %v1826 = vcombine.high %v1761, %v1776
      %v1828 = vunpack.c.l.s4 1934713408
      %v1829 = vunpack.c.0.s8 %v1828
      %v1830 = vlaneseq
      %v1831 = vshrl.u32 %v1830, 7
      %v1832 = vsub.s32 %v1829, %v1831
      %v1833 = vrot.slane %v1825, %v1832
      %v1835 = vunpack.c.l.s4 1934713408
      %v1836 = vunpack.c.0.s8 %v1835
      %v1837 = vlaneseq
      %v1838 = vshrl.u32 %v1837, 7
      %v1839 = vsub.s32 %v1836, %v1838
      %v1840 = vrot.slane %v1826, %v1839
      %v1841 = vcombine.low %v1785, %v1817
      %v1842 = vcombine.high %v1785, %v1817
      %v1843 = vcombine.low %v1792, %v1824
      %v1844 = vcombine.high %v1792, %v1824
      %v1845 = vcombine.low %v1801, %v1833
      %v1846 = vcombine.high %v1801, %v1833
      %v1847 = vcombine.low %v1808, %v1840
      %v1848 = vcombine.high %v1808, %v1840
      %1850 = vrot.lane.b32.xlu0 %v1708, 8
      %v1851 = vpop.permute.xlu0 %1850
      %1854 = vrot.lane.b32.xlu0 %v1709, 16
      %v1855 = vpop.permute.xlu0 %1854
      %1858 = vrot.lane.b32.xlu0 %v1710, 24
      %v1859 = vpop.permute.xlu0 %1858
      %1862 = vrot.lane.b32.xlu0 %v1711, 32
      %v1863 = vpop.permute.xlu0 %1862
      %1866 = vrot.lane.b32.xlu0 %v1712, 40
      %v1867 = vpop.permute.xlu0 %1866
      %1870 = vrot.lane.b32.xlu0 %v1713, 48
      %v1871 = vpop.permute.xlu0 %1870
      %1874 = vrot.lane.b32.xlu0 %v1714, 56
      %v1875 = vpop.permute.xlu0 %1874
      %1878 = vrot.lane.b32.xlu0 %v1841, 64
      %v1879 = vpop.permute.xlu0 %1878
      %1882 = vrot.lane.b32.xlu0 %v1842, 72
      %v1883 = vpop.permute.xlu0 %1882
      %1886 = vrot.lane.b32.xlu0 %v1843, 80
      %v1887 = vpop.permute.xlu0 %1886
      %1890 = vrot.lane.b32.xlu0 %v1844, 88
      %v1891 = vpop.permute.xlu0 %1890
      %1894 = vrot.lane.b32.xlu0 %v1845, 96
      %v1895 = vpop.permute.xlu0 %1894
      %1898 = vrot.lane.b32.xlu0 %v1846, 104
      %v1899 = vpop.permute.xlu0 %1898
      %1902 = vrot.lane.b32.xlu0 %v1847, 112
      %v1903 = vpop.permute.xlu0 %1902
      %1906 = vrot.lane.b32.xlu0 %v1848, 120
      %v1907 = vpop.permute.xlu0 %1906
      %v1909 = vsel %vm1486, %v1707, %v1851
      %v1910 = vsel %vm1488, %v1909, %v1855
      %v1911 = vsel %vm1490, %v1910, %v1859
      %v1912 = vsel %vm869, %v1911, %v1863
      %v1913 = vsel %vm1493, %v1912, %v1867
      %v1914 = vsel %vm1495, %v1913, %v1871
      %v1915 = vsel %vm1497, %v1914, %v1875
      %v1916 = vsel %vm1499, %v1915, %v1879
      %v1917 = vsel %vm1501, %v1916, %v1883
      %v1918 = vsel %vm1503, %v1917, %v1887
      %v1919 = vsel %vm1505, %v1918, %v1891
      %v1920 = vsel %vm1507, %v1919, %v1895
      %v1921 = vsel %vm1509, %v1920, %v1899
      %v1922 = vsel %vm1511, %v1921, %v1903
      %v1923 = vsel %vm1513, %v1922, %v1907
      %v1925 = vsel %vm1059, %v635, 0
      %v1928 = vsel %vm855, %v631, 0
      %1930 = vmatprep.subr.mxu0 0.0
      %1931 = vmatpush1.msra.mxu0 0.0
      %1932 = vmatprep.subr.mxu0 0.0
      %1933 = vmatpush1.msra.mxu0 0.0
      %1934 = vmatprep.subr.mxu0 0.0
      %1935 = vmatpush1.msra.mxu0 0.0
      %1936 = vmatprep.subr.mxu0 0.0
      %1937 = vmatpush1.msra.mxu0 0.0
      %1938 = vmatprep.subr.mxu0 0.0
      %1939 = vmatpush1.msra.mxu0 0.0
      %1940 = vmatprep.subr.mxu0 0.0
      %1941 = vmatpush1.msra.mxu0 0.0
      %1942 = vmatprep.subr.mxu0 0.0
      %1943 = vmatpush1.msra.mxu0 0.0
      %1944 = vmatprep.subr.mxu0 0.0
      %1945 = vmatpush1.msra.mxu0 0.0
      %1946 = vmatprep.subr.mxu0 0.0
      %1947 = vmatpush1.msra.mxu0 0.0
      %1948 = vmatprep.subr.mxu0 0.0
      %1949 = vmatpush1.msra.mxu0 0.0
      %1950 = vmatprep.subr.mxu0 0.0
      %1951 = vmatpush1.msra.mxu0 0.0
      %1952 = vmatprep.subr.mxu0 0.0
      %1953 = vmatpush1.msra.mxu0 0.0
      %1954 = vmatprep.subr.mxu0 0.0
      %1955 = vmatpush1.msra.mxu0 0.0
      %1956 = vmatprep.subr.mxu0 0.0
      %1957 = vmatpush1.msra.mxu0 0.0
      %1958 = vmatprep.subr.mxu0 0.0
      %1959 = vmatpush1.msra.mxu0 0.0
      %1960 = vmatprep.subr.mxu0 0.0
      %1961 = vmatpush1.msra.mxu0 %v1928
      %1962 = vmatprep.subr.mxu0 0.0
      %1963 = vmatpush2.msra.mxu0 0.0
      %1964 = vmatprep.subr.mxu0 0.0
      %1965 = vmatpush2.msra.mxu0 0.0
      %1966 = vmatprep.subr.mxu0 0.0
      %1967 = vmatpush2.msra.mxu0 0.0
      %1968 = vmatprep.subr.mxu0 0.0
      %1969 = vmatpush2.msra.mxu0 0.0
      %1970 = vmatprep.subr.mxu0 0.0
      %1971 = vmatpush2.msra.mxu0 0.0
      %1972 = vmatprep.subr.mxu0 0.0
      %1973 = vmatpush2.msra.mxu0 0.0
      %1974 = vmatprep.subr.mxu0 0.0
      %1975 = vmatpush2.msra.mxu0 0.0
      %1976 = vmatprep.subr.mxu0 0.0
      %1977 = vmatpush2.msra.mxu0 0.0
      %1978 = vmatprep.subr.mxu0 0.0
      %1979 = vmatpush2.msra.mxu0 0.0
      %1980 = vmatprep.subr.mxu0 0.0
      %1981 = vmatpush2.msra.mxu0 0.0
      %1982 = vmatprep.subr.mxu0 0.0
      %1983 = vmatpush2.msra.mxu0 0.0
      %1984 = vmatprep.subr.mxu0 0.0
      %1985 = vmatpush2.msra.mxu0 0.0
      %1986 = vmatprep.subr.mxu0 0.0
      %1987 = vmatpush2.msra.mxu0 0.0
      %1988 = vmatprep.subr.mxu0 0.0
      %1989 = vmatpush2.msra.mxu0 0.0
      %1990 = vmatprep.subr.mxu0 0.0
      %1991 = vmatpush2.msra.mxu0 0.0
      %1992 = vmatprep.subr.mxu0 0.0
      %1993 = vmatpush2.msra.mxu0 0.0
      %1994 = vmatprep.mubr.f32.mxu0 0.0
      %1995 = vmatmul.mubr.f32.gmra.mxu0 %v1925
      %v1996 = vpop.f32.mrf.mxu0
      %v1997 = vadd.f32 %v1514, %v1996
      %v1998 = vpop.f32.mrf.mxu0
      %1999 = vdwg.mxu0
      %v2000 = vadd.f32 %v1997, %v1923
      %2001 = vst [vmem:[%s617] sm:$0x3f] %v2000
      %vm2002 = vcmask 130054
      %2003 = vst.msk [vmem:[%s621 - $0x6] sm:$0xc0] %vm2002, %v1213
      %2004 = vst.msk [vmem:[%s621 + $0x2] sm:$0xf] %vm861, %v1218
      %v2006 = vrot.slane %v852, 4
      %v2008 = vsel %vm855, %v939, %v2006
      %v2012 = vrot.slane %v634, 4
      %v2014 = vsel %vm855, %v1009, %v2012
      %vm2015 = vcmask 97280
      %v2017 = vsel %vm2015, %v638, 0
      %v2019 = vsel %vm855, %v633, 0
      %2021 = vmatprep.subr.mxu0 0.0
      %2022 = vmatpush1.msra.mxu0 0.0
      %2023 = vmatprep.subr.mxu0 0.0
      %2024 = vmatpush1.msra.mxu0 0.0
      %2025 = vmatprep.subr.mxu0 0.0
      %2026 = vmatpush1.msra.mxu0 0.0
      %2027 = vmatprep.subr.mxu0 0.0
      %2028 = vmatpush1.msra.mxu0 0.0
      %2029 = vmatprep.subr.mxu0 0.0
      %2030 = vmatpush1.msra.mxu0 0.0
      %2031 = vmatprep.subr.mxu0 0.0
      %2032 = vmatpush1.msra.mxu0 0.0
      %2033 = vmatprep.subr.mxu0 0.0
      %2034 = vmatpush1.msra.mxu0 0.0
      %2035 = vmatprep.subr.mxu0 0.0
      %2036 = vmatpush1.msra.mxu0 0.0
      %2037 = vmatprep.subr.mxu0 0.0
      %2038 = vmatpush1.msra.mxu0 0.0
      %2039 = vmatprep.subr.mxu0 0.0
      %2040 = vmatpush1.msra.mxu0 0.0
      %2041 = vmatprep.subr.mxu0 0.0
      %2042 = vmatpush1.msra.mxu0 0.0
      %2043 = vmatprep.subr.mxu0 0.0
      %2044 = vmatpush1.msra.mxu0 0.0
      %2045 = vmatprep.subr.mxu0 0.0
      %2046 = vmatpush1.msra.mxu0 0.0
      %2047 = vmatprep.subr.mxu0 0.0
      %2048 = vmatpush1.msra.mxu0 0.0
      %2049 = vmatprep.subr.mxu0 0.0
      %2050 = vmatpush1.msra.mxu0 %v2019
      %2051 = vmatprep.subr.mxu0 0.0
      %2052 = vmatpush1.msra.mxu0 %v2008
      %2053 = vmatprep.subr.mxu0 0.0
      %2054 = vmatpush2.msra.mxu0 0.0
      %2055 = vmatprep.subr.mxu0 0.0
      %2056 = vmatpush2.msra.mxu0 0.0
      %2057 = vmatprep.subr.mxu0 0.0
      %2058 = vmatpush2.msra.mxu0 0.0
      %2059 = vmatprep.subr.mxu0 0.0
      %2060 = vmatpush2.msra.mxu0 0.0
      %2061 = vmatprep.subr.mxu0 0.0
      %2062 = vmatpush2.msra.mxu0 0.0
      %2063 = vmatprep.subr.mxu0 0.0
      %2064 = vmatpush2.msra.mxu0 0.0
      %2065 = vmatprep.subr.mxu0 0.0
      %2066 = vmatpush2.msra.mxu0 0.0
      %2067 = vmatprep.subr.mxu0 0.0
      %2068 = vmatpush2.msra.mxu0 0.0
      %2069 = vmatprep.subr.mxu0 0.0
      %2070 = vmatpush2.msra.mxu0 0.0
      %2071 = vmatprep.subr.mxu0 0.0
      %2072 = vmatpush2.msra.mxu0 0.0
      %2073 = vmatprep.subr.mxu0 0.0
      %2074 = vmatpush2.msra.mxu0 0.0
      %2075 = vmatprep.subr.mxu0 0.0
      %2076 = vmatpush2.msra.mxu0 0.0
      %2077 = vmatprep.subr.mxu0 0.0
      %2078 = vmatpush2.msra.mxu0 0.0
      %2079 = vmatprep.subr.mxu0 0.0
      %2080 = vmatpush2.msra.mxu0 0.0
      %2081 = vmatprep.subr.mxu0 0.0
      %2082 = vmatpush2.msra.mxu0 0.0
      %2083 = vmatprep.subr.mxu0 0.0
      %2084 = vmatpush2.msra.mxu0 0.0
      %2085 = vmatprep.mubr.f32.mxu0 0.0
      %2086 = vmatmul.mubr.f32.gmra.mxu0 %v2017
      %v2087 = vpop.f32.mrf.mxu0
      %v2088 = vadd.f32 0.0, %v2087
      %v2089 = vpop.f32.mrf.mxu0
      %2090 = vdwg.mxu0
      %vm2091 = vcmask 203776
      %v2093 = vsel %vm2091, %v641, 0
      %v2096 = vsel %vm2091, %v642, 0
      %vm2098 = vcmask 1040384
      %v2099 = vsel %vm2098, %v1046, 0
      %2101 = vmatprep.subr.mxu0 0.0
      %2102 = vmatpush1.msra.mxu0 0.0
      %2103 = vmatprep.subr.mxu0 0.0
      %2104 = vmatpush1.msra.mxu0 0.0
      %2105 = vmatprep.subr.mxu0 0.0
      %2106 = vmatpush1.msra.mxu0 0.0
      %2107 = vmatprep.subr.mxu0 0.0
      %2108 = vmatpush1.msra.mxu0 0.0
      %2109 = vmatprep.subr.mxu0 0.0
      %2110 = vmatpush1.msra.mxu0 0.0
      %2111 = vmatprep.subr.mxu0 0.0
      %2112 = vmatpush1.msra.mxu0 0.0
      %2113 = vmatprep.subr.mxu0 0.0
      %2114 = vmatpush1.msra.mxu0 0.0
      %2115 = vmatprep.subr.mxu0 0.0
      %2116 = vmatpush1.msra.mxu0 0.0
      %2117 = vmatprep.subr.mxu0 0.0
      %2118 = vmatpush1.msra.mxu0 0.0
      %2119 = vmatprep.subr.mxu0 0.0
      %2120 = vmatpush1.msra.mxu0 0.0
      %2121 = vmatprep.subr.mxu0 0.0
      %2122 = vmatpush1.msra.mxu0 0.0
      %2123 = vmatprep.subr.mxu0 0.0
      %2124 = vmatpush1.msra.mxu0 0.0
      %2125 = vmatprep.subr.mxu0 0.0
      %2126 = vmatpush1.msra.mxu0 %v2099
      %2127 = vmatprep.subr.mxu0 0.0
      %2128 = vmatpush1.msra.mxu0 %v1042
      %2129 = vmatprep.subr.mxu0 0.0
      %2130 = vmatpush1.msra.mxu0 %v1038
      %2131 = vmatprep.subr.mxu0 0.0
      %2132 = vmatpush1.msra.mxu0 %v2014
      %2133 = vmatprep.subr.mxu0 0.0
      %2134 = vmatpush2.msra.mxu0 0.0
      %2135 = vmatprep.subr.mxu0 0.0
      %2136 = vmatpush2.msra.mxu0 0.0
      %2137 = vmatprep.subr.mxu0 0.0
      %2138 = vmatpush2.msra.mxu0 0.0
      %2139 = vmatprep.subr.mxu0 0.0
      %2140 = vmatpush2.msra.mxu0 0.0
      %2141 = vmatprep.subr.mxu0 0.0
      %2142 = vmatpush2.msra.mxu0 0.0
      %2143 = vmatprep.subr.mxu0 0.0
      %2144 = vmatpush2.msra.mxu0 0.0
      %2145 = vmatprep.subr.mxu0 0.0
      %2146 = vmatpush2.msra.mxu0 0.0
      %2147 = vmatprep.subr.mxu0 0.0
      %2148 = vmatpush2.msra.mxu0 0.0
      %2149 = vmatprep.subr.mxu0 0.0
      %2150 = vmatpush2.msra.mxu0 0.0
      %2151 = vmatprep.subr.mxu0 0.0
      %2152 = vmatpush2.msra.mxu0 0.0
      %2153 = vmatprep.subr.mxu0 0.0
      %2154 = vmatpush2.msra.mxu0 0.0
      %2155 = vmatprep.subr.mxu0 0.0
      %2156 = vmatpush2.msra.mxu0 0.0
      %2157 = vmatprep.subr.mxu0 0.0
      %2158 = vmatpush2.msra.mxu0 0.0
      %2159 = vmatprep.subr.mxu0 0.0
      %2160 = vmatpush2.msra.mxu0 0.0
      %2161 = vmatprep.subr.mxu0 0.0
      %2162 = vmatpush2.msra.mxu0 0.0
      %2163 = vmatprep.subr.mxu0 0.0
      %2164 = vmatpush2.msra.mxu0 0.0
      %2165 = vmatprep.mubr.f32.mxu0 0.0
      %2166 = vmatmul.mubr.f32.gmra.mxu0 %v2093
      %v2167 = vpop.f32.mrf.mxu0
      %v2168 = vadd.f32 0.0, %v2167
      %v2169 = vpop.f32.mrf.mxu0
      %2170 = vmatprep.mubr.f32.mxu0 0.0
      %2171 = vmatmul.mubr.f32.gmra.mxu0 %v2096
      %v2172 = vpop.f32.mrf.mxu0
      %v2173 = vadd.f32 0.0, %v2172
      %v2174 = vpop.f32.mrf.mxu0
      %2175 = vdwg.mxu0
      %v2177 = vcombine.high %v2088, %v2088
      %v2179 = vunpack.c.l.s4 1966171168
      %v2180 = vunpack.c.0.s8 %v2179
      %v2181 = vlaneseq
      %v2182 = vshrl.u32 %v2181, 7
      %v2183 = vsub.s32 %v2180, %v2182
      %v2184 = vrot.slane %v2088, %v2183
      %v2186 = vunpack.c.l.s4 1966171168
      %v2187 = vunpack.c.0.s8 %v2186
      %v2188 = vlaneseq
      %v2189 = vshrl.u32 %v2188, 7
      %v2190 = vsub.s32 %v2187, %v2189
      %v2191 = vrot.slane %v2177, %v2190
      %v2192 = vcombine.high %v2184, %v2184
      %v2193 = vcombine.high %v2191, %v2191
      %v2195 = vunpack.c.l.s4 1966171168
      %v2196 = vunpack.c.0.s8 %v2195
      %v2197 = vlaneseq
      %v2198 = vshrl.u32 %v2197, 7
      %v2199 = vsub.s32 %v2196, %v2198
      %v2200 = vrot.slane %v2184, %v2199
      %v2202 = vunpack.c.l.s4 1966171168
      %v2203 = vunpack.c.0.s8 %v2202
      %v2204 = vlaneseq
      %v2205 = vshrl.u32 %v2204, 7
      %v2206 = vsub.s32 %v2203, %v2205
      %v2207 = vrot.slane %v2191, %v2206
      %v2209 = vunpack.c.l.s4 1966171168
      %v2210 = vunpack.c.0.s8 %v2209
      %v2211 = vlaneseq
      %v2212 = vshrl.u32 %v2211, 7
      %v2213 = vsub.s32 %v2210, %v2212
      %v2214 = vrot.slane %v2192, %v2213
      %v2216 = vunpack.c.l.s4 1966171168
      %v2217 = vunpack.c.0.s8 %v2216
      %v2218 = vlaneseq
      %v2219 = vshrl.u32 %v2218, 7
      %v2220 = vsub.s32 %v2217, %v2219
      %v2221 = vrot.slane %v2193, %v2220
      %v2222 = vcombine.high %v2200, %v2200
      %v2223 = vcombine.high %v2214, %v2214
      %v2224 = vlaneseq
      %v2225 = vshrl.u32 %v2224, 7
      %v2226 = vsub.s32 0, %v2225
      %v2227 = vrot.slane %v2200, %v2226
      %v2228 = vlaneseq
      %v2229 = vshrl.u32 %v2228, 7
      %v2230 = vsub.s32 0, %v2229
      %v2231 = vrot.slane %v2214, %v2230
      %v2232 = vlaneseq
      %v2233 = vshrl.u32 %v2232, 7
      %v2234 = vsub.s32 0, %v2233
      %v2235 = vrot.slane %v2222, %v2234
      %v2236 = vlaneseq
      %v2237 = vshrl.u32 %v2236, 7
      %v2238 = vsub.s32 0, %v2237
      %v2239 = vrot.slane %v2223, %v2238
      %v2240 = vlaneseq
      %v2241 = vshrl.u32 %v2240, 7
      %v2242 = vsub.s32 0, %v2241
      %v2243 = vrot.slane %v2207, %v2242
      %v2244 = vlaneseq
      %v2245 = vshrl.u32 %v2244, 7
      %v2246 = vsub.s32 0, %v2245
      %v2247 = vrot.slane %v2221, %v2246
      %v2254 = vcombine.low %v2227, %v2235
      %v2255 = vcombine.high %v2227, %v2235
      %v2257 = vunpack.c.l.s4 1983009808
      %v2258 = vunpack.c.0.s8 %v2257
      %v2259 = vlaneseq
      %v2260 = vshrl.u32 %v2259, 7
      %v2261 = vsub.s32 %v2258, %v2260
      %v2262 = vrot.slane %v2254, %v2261
      %v2264 = vunpack.c.l.s4 1983009808
      %v2265 = vunpack.c.0.s8 %v2264
      %v2266 = vlaneseq
      %v2267 = vshrl.u32 %v2266, 7
      %v2268 = vsub.s32 %v2265, %v2267
      %v2269 = vrot.slane %v2255, %v2268
      %v2270 = vcombine.low %v2231, %v2239
      %v2271 = vcombine.high %v2231, %v2239
      %v2273 = vunpack.c.l.s4 1983009808
      %v2274 = vunpack.c.0.s8 %v2273
      %v2275 = vlaneseq
      %v2276 = vshrl.u32 %v2275, 7
      %v2277 = vsub.s32 %v2274, %v2276
      %v2278 = vrot.slane %v2270, %v2277
      %v2280 = vunpack.c.l.s4 1983009808
      %v2281 = vunpack.c.0.s8 %v2280
      %v2282 = vlaneseq
      %v2283 = vshrl.u32 %v2282, 7
      %v2284 = vsub.s32 %v2281, %v2283
      %v2285 = vrot.slane %v2271, %v2284
      %v2286 = vcombine.high %v2243, 0.0
      %v2288 = vunpack.c.l.s4 1983009808
      %v2289 = vunpack.c.0.s8 %v2288
      %v2290 = vlaneseq
      %v2291 = vshrl.u32 %v2290, 7
      %v2292 = vsub.s32 %v2289, %v2291
      %v2293 = vrot.slane %v2243, %v2292
      %v2295 = vunpack.c.l.s4 1983009808
      %v2296 = vunpack.c.0.s8 %v2295
      %v2297 = vlaneseq
      %v2298 = vshrl.u32 %v2297, 7
      %v2299 = vsub.s32 %v2296, %v2298
      %v2300 = vrot.slane %v2286, %v2299
      %v2301 = vcombine.high %v2247, 0.0
      %v2303 = vunpack.c.l.s4 1983009808
      %v2304 = vunpack.c.0.s8 %v2303
      %v2305 = vlaneseq
      %v2306 = vshrl.u32 %v2305, 7
      %v2307 = vsub.s32 %v2304, %v2306
      %v2308 = vrot.slane %v2247, %v2307
      %v2310 = vunpack.c.l.s4 1983009808
      %v2311 = vunpack.c.0.s8 %v2310
      %v2312 = vlaneseq
      %v2313 = vshrl.u32 %v2312, 7
      %v2314 = vsub.s32 %v2311, %v2313
      %v2315 = vrot.slane %v2301, %v2314
      %v2316 = vcombine.low %v2262, %v2278
      %v2317 = vcombine.high %v2262, %v2278
      %v2319 = vunpack.c.l.s4 1934713408
      %v2320 = vunpack.c.0.s8 %v2319
      %v2321 = vlaneseq
      %v2322 = vshrl.u32 %v2321, 7
      %v2323 = vsub.s32 %v2320, %v2322
      %v2324 = vrot.slane %v2316, %v2323
      %v2326 = vunpack.c.l.s4 1934713408
      %v2327 = vunpack.c.0.s8 %v2326
      %v2328 = vlaneseq
      %v2329 = vshrl.u32 %v2328, 7
      %v2330 = vsub.s32 %v2327, %v2329
      %v2331 = vrot.slane %v2317, %v2330
      %v2332 = vcombine.low %v2269, %v2285
      %v2333 = vcombine.high %v2269, %v2285
      %v2335 = vunpack.c.l.s4 1934713408
      %v2336 = vunpack.c.0.s8 %v2335
      %v2337 = vlaneseq
      %v2338 = vshrl.u32 %v2337, 7
      %v2339 = vsub.s32 %v2336, %v2338
      %v2340 = vrot.slane %v2332, %v2339
      %v2342 = vunpack.c.l.s4 1934713408
      %v2343 = vunpack.c.0.s8 %v2342
      %v2344 = vlaneseq
      %v2345 = vshrl.u32 %v2344, 7
      %v2346 = vsub.s32 %v2343, %v2345
      %v2347 = vrot.slane %v2333, %v2346
      %v2348 = vcombine.low %v2293, %v2308
      %v2349 = vcombine.high %v2293, %v2308
      %v2351 = vunpack.c.l.s4 1934713408
      %v2352 = vunpack.c.0.s8 %v2351
      %v2353 = vlaneseq
      %v2354 = vshrl.u32 %v2353, 7
      %v2355 = vsub.s32 %v2352, %v2354
      %v2356 = vrot.slane %v2348, %v2355
      %v2358 = vunpack.c.l.s4 1934713408
      %v2359 = vunpack.c.0.s8 %v2358
      %v2360 = vlaneseq
      %v2361 = vshrl.u32 %v2360, 7
      %v2362 = vsub.s32 %v2359, %v2361
      %v2363 = vrot.slane %v2349, %v2362
      %v2364 = vcombine.low %v2300, %v2315
      %v2365 = vcombine.high %v2300, %v2315
      %v2367 = vunpack.c.l.s4 1934713408
      %v2368 = vunpack.c.0.s8 %v2367
      %v2369 = vlaneseq
      %v2370 = vshrl.u32 %v2369, 7
      %v2371 = vsub.s32 %v2368, %v2370
      %v2372 = vrot.slane %v2364, %v2371
      %v2374 = vunpack.c.l.s4 1934713408
      %v2375 = vunpack.c.0.s8 %v2374
      %v2376 = vlaneseq
      %v2377 = vshrl.u32 %v2376, 7
      %v2378 = vsub.s32 %v2375, %v2377
      %v2379 = vrot.slane %v2365, %v2378
      %v2380 = vcombine.low %v2324, %v2356
      %v2381 = vcombine.high %v2324, %v2356
      %v2382 = vcombine.low %v2331, %v2363
      %v2383 = vcombine.high %v2331, %v2363
      %v2384 = vcombine.low %v2340, %v2372
      %v2385 = vcombine.high %v2340, %v2372
      %v2386 = vcombine.low %v2347, %v2379
      %v2387 = vcombine.high %v2347, %v2379
      %v2388 = vcombine.low %v2243, %v2247
      %v2390 = vunpack.c.l.s4 1934713408
      %v2391 = vunpack.c.0.s8 %v2390
      %v2392 = vlaneseq
      %v2393 = vshrl.u32 %v2392, 7
      %v2394 = vsub.s32 %v2391, %v2393
      %v2395 = vrot.slane %v2388, %v2394
      %v2396 = vcombine.low %v2324, %v2395
      %v2397 = vcombine.high %v2324, %v2395
      %2399 = vrot.lane.b32.xlu0 %v2381, 16
      %v2400 = vpop.permute.xlu0 %2399
      %2403 = vrot.lane.b32.xlu0 %v2382, 32
      %v2404 = vpop.permute.xlu0 %2403
      %2407 = vrot.lane.b32.xlu0 %v2383, 48
      %v2408 = vpop.permute.xlu0 %2407
      %2411 = vrot.lane.b32.xlu0 %v2384, 64
      %v2412 = vpop.permute.xlu0 %2411
      %2415 = vrot.lane.b32.xlu0 %v2385, 80
      %v2416 = vpop.permute.xlu0 %2415
      %2419 = vrot.lane.b32.xlu0 %v2386, 96
      %v2420 = vpop.permute.xlu0 %2419
      %2423 = vrot.lane.b32.xlu0 %v2387, 112
      %v2424 = vpop.permute.xlu0 %2423
      %2427 = vrot.lane.b32.xlu0 %v2397, 16
      %v2428 = vpop.permute.xlu0 %2427
      %v2430 = vsel %vm1488, %v2380, %v2400
      %v2431 = vsel %vm869, %v2430, %v2404
      %v2432 = vsel %vm1495, %v2431, %v2408
      %v2433 = vsel %vm1499, %v2432, %v2412
      %v2434 = vsel %vm1503, %v2433, %v2416
      %v2435 = vsel %vm1507, %v2434, %v2420
      %v2436 = vsel %vm1511, %v2435, %v2424
      %v2437 = vsel %vm1488, %v2396, %v2428
      %v2438 = vlaneseq
      %v2439 = vshrl.u32 %v2438, 7
      %v2440 = vsub.s32 0, %v2439
      %v2441 = vrot.slane %v2168, %v2440
      %2443 = vbcast.lane.b32.xlu0 %v2441, 256
      %v2444 = vpop.permute.xlu0 %2443
      %s2446 = sor.u32 256, 8
      %2447 = vbcast.lane.b32.xlu0 %v2441, %s2446
      %v2448 = vpop.permute.xlu0 %2447
      %v2449 = vlaneseq
      %v2450 = vshrl.u32 %v2449, 7
      %v2451 = vsub.s32 1, %v2450
      %v2452 = vrot.slane %v2168, %v2451
      %2454 = vbcast.lane.b32.xlu0 %v2452, 256
      %v2455 = vpop.permute.xlu0 %2454
      %s2457 = sor.u32 256, 8
      %2458 = vbcast.lane.b32.xlu0 %v2452, %s2457
      %v2459 = vpop.permute.xlu0 %2458
      %v2460 = vlaneseq
      %v2461 = vshrl.u32 %v2460, 7
      %v2462 = vsub.s32 2, %v2461
      %v2463 = vrot.slane %v2168, %v2462
      %2465 = vbcast.lane.b32.xlu0 %v2463, 256
      %v2466 = vpop.permute.xlu0 %2465
      %s2468 = sor.u32 256, 8
      %2469 = vbcast.lane.b32.xlu0 %v2463, %s2468
      %v2470 = vpop.permute.xlu0 %2469
      %v2471 = vlaneseq
      %v2472 = vshrl.u32 %v2471, 7
      %v2473 = vsub.s32 3, %v2472
      %v2474 = vrot.slane %v2168, %v2473
      %2476 = vbcast.lane.b32.xlu0 %v2474, 256
      %v2477 = vpop.permute.xlu0 %2476
      %s2479 = sor.u32 256, 8
      %2480 = vbcast.lane.b32.xlu0 %v2474, %s2479
      %v2481 = vpop.permute.xlu0 %2480
      %v2482 = vlaneseq
      %v2483 = vshrl.u32 %v2482, 7
      %v2484 = vsub.s32 4, %v2483
      %v2485 = vrot.slane %v2168, %v2484
      %2487 = vbcast.lane.b32.xlu0 %v2485, 256
      %v2488 = vpop.permute.xlu0 %2487
      %v2489 = vlaneseq
      %v2490 = vshrl.u32 %v2489, 7
      %v2491 = vsub.s32 5, %v2490
      %v2492 = vrot.slane %v2168, %v2491
      %2494 = vbcast.lane.b32.xlu0 %v2492, 256
      %v2495 = vpop.permute.xlu0 %2494
      %v2496 = vcombine.low %v2444, %v2466
      %v2497 = vcombine.high %v2444, %v2466
      %v2499 = vunpack.c.l.s4 1983009808
      %v2500 = vunpack.c.0.s8 %v2499
      %v2501 = vlaneseq
      %v2502 = vshrl.u32 %v2501, 7
      %v2503 = vsub.s32 %v2500, %v2502
      %v2504 = vrot.slane %v2496, %v2503
      %v2506 = vunpack.c.l.s4 1983009808
      %v2507 = vunpack.c.0.s8 %v2506
      %v2508 = vlaneseq
      %v2509 = vshrl.u32 %v2508, 7
      %v2510 = vsub.s32 %v2507, %v2509
      %v2511 = vrot.slane %v2497, %v2510
      %v2512 = vcombine.low %v2455, %v2477
      %v2513 = vcombine.high %v2455, %v2477
      %v2515 = vunpack.c.l.s4 1983009808
      %v2516 = vunpack.c.0.s8 %v2515
      %v2517 = vlaneseq
      %v2518 = vshrl.u32 %v2517, 7
      %v2519 = vsub.s32 %v2516, %v2518
      %v2520 = vrot.slane %v2512, %v2519
      %v2522 = vunpack.c.l.s4 1983009808
      %v2523 = vunpack.c.0.s8 %v2522
      %v2524 = vlaneseq
      %v2525 = vshrl.u32 %v2524, 7
      %v2526 = vsub.s32 %v2523, %v2525
      %v2527 = vrot.slane %v2513, %v2526
      %v2528 = vcombine.high %v2488, 0.0
      %v2530 = vunpack.c.l.s4 1983009808
      %v2531 = vunpack.c.0.s8 %v2530
      %v2532 = vlaneseq
      %v2533 = vshrl.u32 %v2532, 7
      %v2534 = vsub.s32 %v2531, %v2533
      %v2535 = vrot.slane %v2488, %v2534
      %v2537 = vunpack.c.l.s4 1983009808
      %v2538 = vunpack.c.0.s8 %v2537
      %v2539 = vlaneseq
      %v2540 = vshrl.u32 %v2539, 7
      %v2541 = vsub.s32 %v2538, %v2540
      %v2542 = vrot.slane %v2528, %v2541
      %v2543 = vcombine.high %v2495, 0.0
      %v2545 = vunpack.c.l.s4 1983009808
      %v2546 = vunpack.c.0.s8 %v2545
      %v2547 = vlaneseq
      %v2548 = vshrl.u32 %v2547, 7
      %v2549 = vsub.s32 %v2546, %v2548
      %v2550 = vrot.slane %v2495, %v2549
      %v2552 = vunpack.c.l.s4 1983009808
      %v2553 = vunpack.c.0.s8 %v2552
      %v2554 = vlaneseq
      %v2555 = vshrl.u32 %v2554, 7
      %v2556 = vsub.s32 %v2553, %v2555
      %v2557 = vrot.slane %v2543, %v2556
      %v2558 = vcombine.low %v2504, %v2520
      %v2559 = vcombine.high %v2504, %v2520
      %v2561 = vunpack.c.l.s4 1934713408
      %v2562 = vunpack.c.0.s8 %v2561
      %v2563 = vlaneseq
      %v2564 = vshrl.u32 %v2563, 7
      %v2565 = vsub.s32 %v2562, %v2564
      %v2566 = vrot.slane %v2558, %v2565
      %v2568 = vunpack.c.l.s4 1934713408
      %v2569 = vunpack.c.0.s8 %v2568
      %v2570 = vlaneseq
      %v2571 = vshrl.u32 %v2570, 7
      %v2572 = vsub.s32 %v2569, %v2571
      %v2573 = vrot.slane %v2559, %v2572
      %v2574 = vcombine.low %v2511, %v2527
      %v2575 = vcombine.high %v2511, %v2527
      %v2577 = vunpack.c.l.s4 1934713408
      %v2578 = vunpack.c.0.s8 %v2577
      %v2579 = vlaneseq
      %v2580 = vshrl.u32 %v2579, 7
      %v2581 = vsub.s32 %v2578, %v2580
      %v2582 = vrot.slane %v2574, %v2581
      %v2584 = vunpack.c.l.s4 1934713408
      %v2585 = vunpack.c.0.s8 %v2584
      %v2586 = vlaneseq
      %v2587 = vshrl.u32 %v2586, 7
      %v2588 = vsub.s32 %v2585, %v2587
      %v2589 = vrot.slane %v2575, %v2588
      %v2590 = vcombine.low %v2535, %v2550
      %v2591 = vcombine.high %v2535, %v2550
      %v2593 = vunpack.c.l.s4 1934713408
      %v2594 = vunpack.c.0.s8 %v2593
      %v2595 = vlaneseq
      %v2596 = vshrl.u32 %v2595, 7
      %v2597 = vsub.s32 %v2594, %v2596
      %v2598 = vrot.slane %v2590, %v2597
      %v2600 = vunpack.c.l.s4 1934713408
      %v2601 = vunpack.c.0.s8 %v2600
      %v2602 = vlaneseq
      %v2603 = vshrl.u32 %v2602, 7
      %v2604 = vsub.s32 %v2601, %v2603
      %v2605 = vrot.slane %v2591, %v2604
      %v2606 = vcombine.low %v2542, %v2557
      %v2607 = vcombine.high %v2542, %v2557
      %v2609 = vunpack.c.l.s4 1934713408
      %v2610 = vunpack.c.0.s8 %v2609
      %v2611 = vlaneseq
      %v2612 = vshrl.u32 %v2611, 7
      %v2613 = vsub.s32 %v2610, %v2612
      %v2614 = vrot.slane %v2606, %v2613
      %v2616 = vunpack.c.l.s4 1934713408
      %v2617 = vunpack.c.0.s8 %v2616
      %v2618 = vlaneseq
      %v2619 = vshrl.u32 %v2618, 7
      %v2620 = vsub.s32 %v2617, %v2619
      %v2621 = vrot.slane %v2607, %v2620
      %v2622 = vcombine.low %v2566, %v2598
      %v2623 = vcombine.high %v2566, %v2598
      %v2624 = vcombine.low %v2573, %v2605
      %v2625 = vcombine.high %v2573, %v2605
      %v2626 = vcombine.low %v2582, %v2614
      %v2627 = vcombine.high %v2582, %v2614
      %v2628 = vcombine.low %v2589, %v2621
      %v2629 = vcombine.high %v2589, %v2621
      %v2630 = vcombine.low %v2448, %v2470
      %v2632 = vunpack.c.l.s4 1983009808
      %v2633 = vunpack.c.0.s8 %v2632
      %v2634 = vlaneseq
      %v2635 = vshrl.u32 %v2634, 7
      %v2636 = vsub.s32 %v2633, %v2635
      %v2637 = vrot.slane %v2630, %v2636
      %v2638 = vcombine.low %v2459, %v2481
      %v2640 = vunpack.c.l.s4 1983009808
      %v2641 = vunpack.c.0.s8 %v2640
      %v2642 = vlaneseq
      %v2643 = vshrl.u32 %v2642, 7
      %v2644 = vsub.s32 %v2641, %v2643
      %v2645 = vrot.slane %v2638, %v2644
      %s2647 = sor.u32 256, 8
      %2648 = vbcast.lane.b32.xlu0 %v2485, %s2647
      %v2649 = vpop.permute.xlu0 %2648
      %s2651 = sor.u32 256, 8
      %2652 = vbcast.lane.b32.xlu0 %v2492, %s2651
      %v2653 = vpop.permute.xlu0 %2652
      %v2654 = vcombine.low %v2637, %v2645
      %v2656 = vunpack.c.l.s4 1934713408
      %v2657 = vunpack.c.0.s8 %v2656
      %v2658 = vlaneseq
      %v2659 = vshrl.u32 %v2658, 7
      %v2660 = vsub.s32 %v2657, %v2659
      %v2661 = vrot.slane %v2654, %v2660
      %v2662 = vcombine.low %v2649, %v2653
      %v2664 = vunpack.c.l.s4 1934713408
      %v2665 = vunpack.c.0.s8 %v2664
      %v2666 = vlaneseq
      %v2667 = vshrl.u32 %v2666, 7
      %v2668 = vsub.s32 %v2665, %v2667
      %v2669 = vrot.slane %v2662, %v2668
      %v2670 = vcombine.low %v2661, %v2669
      %v2671 = vcombine.high %v2661, %v2669
      %2673 = vrot.lane.b32.xlu0 %v2623, 16
      %v2674 = vpop.permute.xlu0 %2673
      %2677 = vrot.lane.b32.xlu0 %v2624, 32
      %v2678 = vpop.permute.xlu0 %2677
      %2681 = vrot.lane.b32.xlu0 %v2625, 48
      %v2682 = vpop.permute.xlu0 %2681
      %2685 = vrot.lane.b32.xlu0 %v2626, 64
      %v2686 = vpop.permute.xlu0 %2685
      %2689 = vrot.lane.b32.xlu0 %v2627, 80
      %v2690 = vpop.permute.xlu0 %2689
      %2693 = vrot.lane.b32.xlu0 %v2628, 96
      %v2694 = vpop.permute.xlu0 %2693
      %2697 = vrot.lane.b32.xlu0 %v2629, 112
      %v2698 = vpop.permute.xlu0 %2697
      %2701 = vrot.lane.b32.xlu0 %v2671, 16
      %v2702 = vpop.permute.xlu0 %2701
      %v2704 = vsel %vm1488, %v2622, %v2674
      %v2705 = vsel %vm869, %v2704, %v2678
      %v2706 = vsel %vm1495, %v2705, %v2682
      %v2707 = vsel %vm1499, %v2706, %v2686
      %v2708 = vsel %vm1503, %v2707, %v2690
      %v2709 = vsel %vm1507, %v2708, %v2694
      %v2710 = vsel %vm1511, %v2709, %v2698
      %v2711 = vsel %vm1488, %v2670, %v2702
      %v2713 = vsel %vm1059, %v636, 0
      %v2715 = vsel %vm855, %v632, 0
      %v2717 = vsel %vm855, %v868, 0
      %2719 = vmatprep.subr.mxu0 0.0
      %2720 = vmatpush1.msra.mxu0 0.0
      %2721 = vmatprep.subr.mxu0 0.0
      %2722 = vmatpush1.msra.mxu0 0.0
      %2723 = vmatprep.subr.mxu0 0.0
      %2724 = vmatpush1.msra.mxu0 0.0
      %2725 = vmatprep.subr.mxu0 0.0
      %2726 = vmatpush1.msra.mxu0 0.0
      %2727 = vmatprep.subr.mxu0 0.0
      %2728 = vmatpush1.msra.mxu0 0.0
      %2729 = vmatprep.subr.mxu0 0.0
      %2730 = vmatpush1.msra.mxu0 0.0
      %2731 = vmatprep.subr.mxu0 0.0
      %2732 = vmatpush1.msra.mxu0 0.0
      %2733 = vmatprep.subr.mxu0 0.0
      %2734 = vmatpush1.msra.mxu0 0.0
      %2735 = vmatprep.subr.mxu0 0.0
      %2736 = vmatpush1.msra.mxu0 0.0
      %2737 = vmatprep.subr.mxu0 0.0
      %2738 = vmatpush1.msra.mxu0 0.0
      %2739 = vmatprep.subr.mxu0 0.0
      %2740 = vmatpush1.msra.mxu0 0.0
      %2741 = vmatprep.subr.mxu0 0.0
      %2742 = vmatpush1.msra.mxu0 0.0
      %2743 = vmatprep.subr.mxu0 0.0
      %2744 = vmatpush1.msra.mxu0 0.0
      %2745 = vmatprep.subr.mxu0 0.0
      %2746 = vmatpush1.msra.mxu0 0.0
      %2747 = vmatprep.subr.mxu0 0.0
      %2748 = vmatpush1.msra.mxu0 0.0
      %2749 = vmatprep.subr.mxu0 %v2717
      %2750 = vmatpush1.msra.mxu0 %v2715
      %2751 = vmatprep.subr.mxu0 0.0
      %2752 = vmatpush2.msra.mxu0 0.0
      %2753 = vmatprep.subr.mxu0 0.0
      %2754 = vmatpush2.msra.mxu0 0.0
      %2755 = vmatprep.subr.mxu0 0.0
      %2756 = vmatpush2.msra.mxu0 0.0
      %2757 = vmatprep.subr.mxu0 0.0
      %2758 = vmatpush2.msra.mxu0 0.0
      %2759 = vmatprep.subr.mxu0 0.0
      %2760 = vmatpush2.msra.mxu0 0.0
      %2761 = vmatprep.subr.mxu0 0.0
      %2762 = vmatpush2.msra.mxu0 0.0
      %2763 = vmatprep.subr.mxu0 0.0
      %2764 = vmatpush2.msra.mxu0 0.0
      %2765 = vmatprep.subr.mxu0 0.0
      %2766 = vmatpush2.msra.mxu0 0.0
      %2767 = vmatprep.subr.mxu0 0.0
      %2768 = vmatpush2.msra.mxu0 0.0
      %2769 = vmatprep.subr.mxu0 0.0
      %2770 = vmatpush2.msra.mxu0 0.0
      %2771 = vmatprep.subr.mxu0 0.0
      %2772 = vmatpush2.msra.mxu0 0.0
      %2773 = vmatprep.subr.mxu0 0.0
      %2774 = vmatpush2.msra.mxu0 0.0
      %2775 = vmatprep.subr.mxu0 0.0
      %2776 = vmatpush2.msra.mxu0 0.0
      %2777 = vmatprep.subr.mxu0 0.0
      %2778 = vmatpush2.msra.mxu0 0.0
      %2779 = vmatprep.subr.mxu0 0.0
      %2780 = vmatpush2.msra.mxu0 0.0
      %2781 = vmatprep.subr.mxu0 0.0
      %2782 = vmatpush2.msra.mxu0 0.0
      %2783 = vmatprep.mubr.f32.mxu0 0.0
      %2784 = vmatmul.mubr.f32.gmra.mxu0 %v2713
      %v2785 = vpop.f32.mrf.mxu0
      %v2786 = vadd.f32 %v2436, %v2785
      %v2787 = vpop.f32.mrf.mxu0
      %v2788 = vadd.f32 %v2437, %v2787
      %2789 = vdwg.mxu0
      %v2790 = vadd.f32 %v2786, %v2710
      %v2791 = vadd.f32 %v2788, %v2711
      %2792 = vst [vmem:[%s626] sm:$0x3f] %v2790
      %vm2793 = vcmask 259072
      %2794 = vst.msk [vmem:[%s626 + $0x8] sm:$0x3f] %vm2793, %v2791
      %vm2795 = vcmask 80902
      %2796 = vst.msk [vmem:[%s630 - $0x6] sm:$0xc0] %vm2795, %v2168
      %2797 = vst.msk [vmem:[%s630 + $0x2] sm:$0xf] %vm1021, %v2173
      %p2798 = scmp.lt.s32.totalorder %s29, 1
      %s2799 = scalar_select %p2798, %s29, 1
      %s2800 = smul.addr %s2799, 8
      %s2801 = scalar_lea.vmem %s14, %s2800
      %p2802 = scmp.lt.s32.totalorder %s29, 1
      %s2803 = scalar_select %p2802, %s29, 1
      %s2804 = smul.addr %s2803, 8
      %s2805 = scalar_lea.vmem %s15, %s2804
      %p2806 = scmp.lt.s32.totalorder %s29, 1
      %s2807 = scalar_select %p2806, %s29, 1
      %s2808 = smul.addr %s2807, 2
      %s2809 = smul.addr %s2808, 8
      %s2810 = scalar_lea.vmem %s16, %s2809
      %p2811 = scmp.lt.s32.totalorder %s29, 1
      %s2812 = scalar_select %p2811, %s29, 1
      %s2813 = smul.addr %s2812, 8
      %s2814 = scalar_lea.vmem %s17, %s2813
      // Predicated region
      $region77: #{tpu_custom_call.1} parent=75 // pred_check
        %p2815 = pneg %p361
      $region78: #{tpu_custom_call.1} parent=75 // pred_check_branch
        %2817 = sbr.rel (%p2815) target = $region80
      $region79: #{tpu_custom_call.1} parent=75 // pred_region
        _
      $region80: #{tpu_custom_call.1} parent=75 // pred_fallthru
        _
      // Predicated region
      $region81: #{tpu_custom_call.1} parent=75 // pred_check
        %p2818 = pneg %p387
      $region82: #{tpu_custom_call.1} parent=75 // pred_check_branch
        %2820 = sbr.rel (%p2818) target = $region84
      $region83: #{tpu_custom_call.1} parent=75 // pred_region
        _
      $region84: #{tpu_custom_call.1} parent=75 // pred_fallthru
        _
      // Predicated region
      $region85: #{tpu_custom_call.1} parent=75 // pred_check
        %p2821 = pneg %p413
      $region86: #{tpu_custom_call.1} parent=75 // pred_check_branch
        %2823 = sbr.rel (%p2821) target = $region88
      $region87: #{tpu_custom_call.1} parent=75 // pred_region
        _
      $region88: #{tpu_custom_call.1} parent=75 // pred_fallthru
        _
      // Predicated region
      $region89: #{tpu_custom_call.1} parent=75 // pred_check
        %p2824 = pneg %p439
      $region90: #{tpu_custom_call.1} parent=75 // pred_check_branch
        %2826 = sbr.rel (%p2824) target = $region92
      $region91: #{tpu_custom_call.1} parent=75 // pred_region
        _
      $region92: #{tpu_custom_call.1} parent=75 // pred_fallthru
        _
    $region76: #{tpu_custom_call.1} parent=5 // pred_fallthru
      _
    %p2827 = scmp.le.s32.totalorder 2, %s24
    // Predicated region
    $region93: #{tpu_custom_call.1} parent=5 // pred_check
      %p2828 = pneg %p2827
    $region94: #{tpu_custom_call.1} parent=5 // pred_check_branch
      %2830 = sbr.rel (%p2828) target = $region96
    $region95: #{tpu_custom_call.1} parent=5 // pred_region
      %s2831 = ssub.s32 %s24, 2
      // Predicated region
      $region97: #{tpu_custom_call.1} parent=95 // pred_check
        %p2832 = pneg %p367
      $region98: #{tpu_custom_call.1} parent=95 // pred_check_branch
        %2834 = sbr.rel (%p2832) target = $region100
      $region99: #{tpu_custom_call.1} parent=95 // pred_region
        %p2835 = scmp.lt.s32.totalorder %s30, 1
        %s2836 = scalar_select %p2835, %s30, 1
        %s2837 = smul.addr %s2836, 8
        %s2838 = scalar_lea.vmem %s14, %s2837
      $region100: #{tpu_custom_call.1} parent=95 // pred_fallthru
        _
      // Predicated region
      $region101: #{tpu_custom_call.1} parent=95 // pred_check
        %p2839 = pneg %p393
      $region102: #{tpu_custom_call.1} parent=95 // pred_check_branch
        %2841 = sbr.rel (%p2839) target = $region104
      $region103: #{tpu_custom_call.1} parent=95 // pred_region
        %p2842 = scmp.lt.s32.totalorder %s30, 1
        %s2843 = scalar_select %p2842, %s30, 1
        %s2844 = smul.addr %s2843, 8
        %s2845 = scalar_lea.vmem %s15, %s2844
      $region104: #{tpu_custom_call.1} parent=95 // pred_fallthru
        _
      // Predicated region
      $region105: #{tpu_custom_call.1} parent=95 // pred_check
        %p2846 = pneg %p419
      $region106: #{tpu_custom_call.1} parent=95 // pred_check_branch
        %2848 = sbr.rel (%p2846) target = $region108
      $region107: #{tpu_custom_call.1} parent=95 // pred_region
        %p2849 = scmp.lt.s32.totalorder %s30, 1
        %s2850 = scalar_select %p2849, %s30, 1
        %s2851 = smul.addr %s2850, 2
        %s2852 = smul.addr %s2851, 8
        %s2853 = scalar_lea.vmem %s16, %s2852
      $region108: #{tpu_custom_call.1} parent=95 // pred_fallthru
        _
      // Predicated region
      $region109: #{tpu_custom_call.1} parent=95 // pred_check
        %p2854 = pneg %p445
      $region110: #{tpu_custom_call.1} parent=95 // pred_check_branch
        %2856 = sbr.rel (%p2854) target = $region112
      $region111: #{tpu_custom_call.1} parent=95 // pred_region
        %p2857 = scmp.lt.s32.totalorder %s30, 1
        %s2858 = scalar_select %p2857, %s30, 1
        %s2859 = smul.addr %s2858, 8
        %s2860 = scalar_lea.vmem %s17, %s2859
      $region112: #{tpu_custom_call.1} parent=95 // pred_fallthru
        _
    $region96: #{tpu_custom_call.1} parent=5 // pred_fallthru
      _
  $region6: #{tpu_custom_call.1} parent=0 // loop_footer
    %s28 = sadd.s32 1, %s24
  $region7: #{tpu_custom_call.1} parent=0 // loop_footer_branch
    %23 = sbr.rel target = $region3
  $region8: #{tpu_custom_call.1} parent=0 // loop_exit
    _

</llo_original>
